<compile_context>
chip_gen: v5e
topology: v5e:2x2
jax: 0.10.0
libtpu: 0.0.40
codegen_flags: <defaults>
</compile_context>

<pallas_src>
import functools

import numpy as np
import jax
import jax.numpy as jnp
from jax import lax
from jax.experimental import pallas as pl
from jax.experimental.pallas import tpu as pltpu


def _round_up(v, m):
    return (v + m - 1) // m * m


def _pick_tb(N, HW, max_lanes=2048):
    """Largest images-per-step TB dividing N with a 128-aligned lane axis."""
    best = None
    for t in range(1, N + 1):
        if N % t == 0 and t * HW <= max_lanes and (t * HW) % 128 == 0:
            best = t
    return best if best is not None else N


def _make_kernel(C, CC1p, V1P, C_p, W, L):
    """C: total channels; CC1p/V1P/C_p: padded stage widths; L: lane axis."""
    K = 5
    DOT = functools.partial(jnp.dot, preferred_element_type=jnp.float32)

    def _silu(v):
        # exp + approx reciprocal both go to the EUP, keeping the VALU slot free
        return v * pl.reciprocal(1.0 + jnp.exp(-v), approx=True)

    def _fill_stack(stk_ref, v, rows, mask_ref, step):
        # stk[t*rows + c, p] = v[c, p + (t-2)*step], zero outside the valid
        # range (masks also kill cross-image leakage of the batched lane axis).
        for t in range(K):
            d = t - 2
            if d == 0:
                stk_ref[t * rows:(t + 1) * rows, :] = v
            else:
                m = mask_ref[t]
                if rows != m.shape[0]:
                    m = m[0:rows, :]
                r = pltpu.roll(v, (-d * step) % L, 1)
                stk_ref[t * rows:(t + 1) * rows, :] = r * m

    def kernel(x_ref, a1s_ref, a1b_ref, w2_ref, b2_ref, w3_ref, b3_ref,
               w4_ref, b4_ref, w6_ref, b6_ref, w7_ref, b7_ref, w8_ref, b8_ref,
               hmask_ref, wmask_ref, out_ref, stk_ref, z_ref):
        # ---------------- GC1 = SparseGhostConv(c1 -> c_), act = SiLU --------
        # cv1: depthwise 1x1 (+BN, SiLU) then dense 1x1 c1 -> cc1 (+BN, SiLU)
        t1 = _silu(x_ref[...] * a1s_ref[...] + a1b_ref[...])            # (C, L)
        y1 = _silu(DOT(w2_ref[...], t1) + b2_ref[...])                  # (CC1p, L)
        z_ref[0:CC1p, :] = y1                      # GhostConv concat, part 1

        # cv2 stage 1: dense (5,1) conv along H as ONE stacked-K matmul
        _fill_stack(stk_ref, y1, CC1p, hmask_ref, W)
        u1 = _silu(DOT(w3_ref[...], stk_ref[0:K * CC1p, :]) + b3_ref[...])

        # cv2 stage 2: grouped (1,5) conv along W as ONE block-diagonal matmul
        _fill_stack(stk_ref, u1, CC1p, wmask_ref, 1)
        z_ref[CC1p:CC1p + V1P, :] = _silu(
            DOT(w4_ref[...], stk_ref[0:K * CC1p, :]) + b4_ref[...])

        # ---------------- GC2 = SparseGhostConv(c_ -> c2), act = Identity ----
        # cv1 (depthwise 1x1+BN folded into the dense 1x1 in the wrapper): one
        # matmul over the GhostConv concat [y1; v1]; rows >= C_ of w6/b6 are
        # zero, so y2_full already sits in final-output rows 0..C_-1.
        y2_full = DOT(w6_ref[...], z_ref[...]) + b6_ref[...]            # (C, L)
        y2 = y2_full if C_p == C else y2_full[0:C_p, :]                 # (C_p, L)

        # cv2 stage 1: dense (5,1) conv along H (Identity act)
        _fill_stack(stk_ref, y2, C_p, hmask_ref, W)
        u2 = DOT(w7_ref[...], stk_ref[0:K * C_p, :]) + b7_ref[...]      # (C_p, L)

        # cv2 stage 2: grouped (1,5) conv along W; the oc = C_ + 3g + j channel
        # interleave is baked into the rows of w8, so the result lands directly
        # in final-output rows C_..C-1 (rows < C_ are zero).
        _fill_stack(stk_ref, u2, C_p, wmask_ref, 1)
        v2_full = DOT(w8_ref[...], stk_ref[0:K * C_p, :]) + b8_ref[...]  # (C, L)

        # residual + single bulk tile-aligned store
        out_ref[...] = y2_full + v2_full + x_ref[...]

    return kernel


def sparse_ghost_bottleneck(x, params):
    N, C, H, W = x.shape
    HW = H * W
    CC1 = int(params['b2'].shape[0])   # hidden width of GC1  (= c2 // 16)
    C_ = int(params['b6'].shape[0])    # bottleneck width     (= c2 // 4)
    assert 4 * C_ == C, "s=1 bottleneck requires c1 == c2"
    CC1p = _round_up(CC1, 8)
    C_p = _round_up(C_, 8)
    V1P = _round_up(3 * CC1, 8)
    P = max(CC1p, C_p)

    tb = _pick_tb(N, HW)
    Lb = tb * HW
    n_blocks = N // tb

    p = {k: np.asarray(v, np.float32) for k, v in params.items()}

    def _bcast_rows(vec, rows, row_offset=0):
        # pre-broadcast a per-channel column to full lane width (no in-kernel
        # broadcast_in_dim); padded rows stay zero.
        out = np.zeros((rows, Lb), np.float32)
        v = np.asarray(vec, np.float32)
        out[row_offset:row_offset + v.shape[0], :] = v[:, None]
        return out

    # --------- pack weights into MXU-friendly, zero-padded layouts ------------
    a1s_b = _bcast_rows(p['a1s'], C)
    a1b_b = _bcast_rows(p['a1b'], C)

    w2p = np.zeros((CC1p, C), np.float32); w2p[:CC1] = p['w2']
    b2_b = _bcast_rows(p['b2'], CC1p)

    # stacked-K (5,1) conv: u1[o] = sum_t sum_c w3[o,c,t] * y1[c, s+(t-2)W]
    w3_3d = p['w3'].reshape(CC1, CC1, 5)
    w3s = np.zeros((CC1p, 5 * CC1p), np.float32)
    for t in range(5):
        w3s[:CC1, t * CC1p:t * CC1p + CC1] = w3_3d[:, :, t]
    b3_b = _bcast_rows(p['b3'], CC1p)

    # block-diagonal grouped (1,5) conv: row 3g+j, col t*CC1p+g
    w4bd = np.zeros((V1P, 5 * CC1p), np.float32)
    for g in range(CC1):
        for j in range(3):
            for t in range(5):
                w4bd[3 * g + j, t * CC1p + g] = p['w4'][3 * g + j, t]
    b4_b = _bcast_rows(p['b4'], V1P)

    # GC2 cv1: fold depthwise 1x1+BN (Identity act) into the dense 1x1; map
    # columns onto the stacked [y1 (CC1p rows); v1 (V1P rows)] layout, and give
    # it C output rows (rows >= C_ zero) so it lands in final output position.
    w6_eff = p['w6'] * p['a2s'][None, :]
    b6_eff = p['b6'] + p['w6'] @ p['a2b']
    w6c = np.zeros((C, CC1p + V1P), np.float32)
    w6c[:C_, :CC1] = w6_eff[:, :CC1]
    w6c[:C_, CC1p:CC1p + 3 * CC1] = w6_eff[:, CC1:]
    b6_b = _bcast_rows(b6_eff, C)

    w7_3d = p['w7'].reshape(C_, C_, 5)
    w7s = np.zeros((C_p, 5 * C_p), np.float32)
    for t in range(5):
        w7s[:C_, t * C_p:t * C_p + C_] = w7_3d[:, :, t]
    b7_b = _bcast_rows(p['b7'], C_p)

    # final grouped (1,5) conv with the output interleave baked in:
    # output row C_ + 3g + j, column t*C_p + g; rows < C_ are zero.
    w8c = np.zeros((C, 5 * C_p), np.float32)
    for g in range(C_):
        for j in range(3):
            for t in range(5):
                w8c[C_ + 3 * g + j, t * C_p + g] = p['w8'][3 * g + j, t]
    b8_b = _bcast_rows(p['b8'], C, row_offset=C_)

    # boundary masks for the roll-based shifts over the flat (TB*H*W) lane axis
    s_idx = np.arange(Lb)
    s_im = s_idx % HW
    cols = s_idx % W
    hmask_b = np.zeros((5, P, Lb), np.float32)
    wmask_b = np.zeros((5, P, Lb), np.float32)
    for t in range(5):
        d = t - 2
        hv = ((s_im + d * W >= 0) & (s_im + d * W < HW)).astype(np.float32)
        wv = ((cols + d >= 0) & (cols + d < W)).astype(np.float32)
        hmask_b[t, :, :] = hv[None, :]
        wmask_b[t, :, :] = wv[None, :]

    consts = [a1s_b, a1b_b, w2p, b2_b, w3s, b3_b, w4bd, b4_b,
              w6c, b6_b, w7s, b7_b, w8c, b8_b, hmask_b, wmask_b]
    consts = [jnp.asarray(c) for c in consts]

    def _const_spec(shape):
        nd = len(shape)
        return pl.BlockSpec(shape, lambda b, _nd=nd: (0,) * _nd)

    # lane-dense layout: (N, C, H, W) -> (C, N*H*W)
    x2 = jnp.asarray(x, jnp.float32).reshape(N, C, HW)
    x2 = jnp.transpose(x2, (1, 0, 2)).reshape(C, N * HW)

    kernel = _make_kernel(C, CC1p, V1P, C_p, W, Lb)

    out = pl.pallas_call(
        kernel,
        out_shape=jax.ShapeDtypeStruct((C, N * HW), jnp.float32),
        grid=(n_blocks,),
        in_specs=[pl.BlockSpec((C, Lb), lambda b: (0, b))]
                 + [_const_spec(c.shape) for c in consts],
        out_specs=pl.BlockSpec((C, Lb), lambda b: (0, b)),
        scratch_shapes=[pltpu.VMEM((5 * P, Lb), jnp.float32),     # shift stack
                        pltpu.VMEM((CC1p + V1P, Lb), jnp.float32)],  # [y1; v1]
        input_output_aliases={0: 0},
        compiler_params=pltpu.CompilerParams(
            dimension_semantics=("parallel",)),
    )(x2, *consts)

    return out.reshape(C, N, HW).transpose(1, 0, 2).reshape(N, C, H, W)


def init_params(key, c1, c2):
    """Deterministic synthetic params with BatchNorm folded (eval mode)."""
    assert c1 == c2 and c2 % 16 == 0
    c_ = c2 // 4          # bottleneck hidden channels
    cc1 = c_ // 4         # hidden width of GC1 = SparseGhostConv(c1, c_)
    eps = 1e-5
    keys = jax.random.split(key, 16)

    def w_init(k, shape, fan_in):
        b = 1.0 / np.sqrt(fan_in)
        return jax.random.uniform(k, shape, jnp.float32, -b, b)

    def bn_fold(k, c):
        k1, k2, k3, k4 = jax.random.split(k, 4)
        gamma = jax.random.uniform(k1, (c,), jnp.float32, 0.8, 1.2)
        beta = 0.1 * jax.random.normal(k2, (c,), jnp.float32)
        mean = 0.1 * jax.random.normal(k3, (c,), jnp.float32)
        var = jax.random.uniform(k4, (c,), jnp.float32, 0.5, 1.5)
        s = gamma / jnp.sqrt(var + eps)
        return s, beta - mean * s

    p = {}
    # ----- GC1 = SparseGhostConv(c1, c_, k=1, act=SiLU) -----
    w1 = w_init(keys[0], (c1,), 1)                      # Conv2d(c1,c1,(1,1),g=c1)
    s, b = bn_fold(keys[1], c1)
    p['a1s'], p['a1b'] = w1 * s, b
    w2 = w_init(keys[2], (cc1, c1), c1)                 # Conv2d(c1,cc1,(1,1))
    s, b = bn_fold(keys[3], cc1)
    p['w2'], p['b2'] = w2 * s[:, None], b
    w3 = w_init(keys[4], (cc1, cc1, 5), cc1 * 5)        # Conv2d(cc1,cc1,(5,1))
    s, b = bn_fold(keys[5], cc1)
    p['w3'], p['b3'] = (w3 * s[:, None, None]).reshape(cc1 * cc1, 5), b
    w4 = w_init(keys[6], (3 * cc1, 5), 5)               # Conv2d(cc1,3cc1,(1,5),g=cc1)
    s, b = bn_fold(keys[7], 3 * cc1)
    p['w4'], p['b4'] = w4 * s[:, None], b
    # ----- GC2 = SparseGhostConv(c_, c2, k=1, act=Identity) -----
    w5 = w_init(keys[8], (c_,), 1)                      # Conv2d(c_,c_,(1,1),g=c_)
    s, b = bn_fold(keys[9], c_)
    p['a2s'], p['a2b'] = w5 * s, b
    w6 = w_init(keys[10], (c_, c_), c_)                 # Conv2d(c_,c_,(1,1))
    s, b = bn_fold(keys[11], c_)
    p['w6'], p['b6'] = w6 * s[:, None], b
    w7 = w_init(keys[12], (c_, c_, 5), c_ * 5)          # Conv2d(c_,c_,(5,1))
    s, b = bn_fold(keys[13], c_)
    p['w7'], p['b7'] = (w7 * s[:, None, None]).reshape(c_ * c_, 5), b
    w8 = w_init(keys[14], (3 * c_, 5), 5)               # Conv2d(c_,3c_,(1,5),g=c_)
    s, b = bn_fold(keys[15], 3 * c_)
    p['w8'], p['b8'] = w8 * s[:, None], b
    return p


# ---------------- pure-JAX reference (XLA convs, f32 HIGHEST) -----------------
def _conv2d(x, w, padding, groups=1):
    return jax.lax.conv_general_dilated(
        x, w, window_strides=(1, 1), padding=padding,
        dimension_numbers=('NCHW', 'OIHW', 'NCHW'),
        feature_group_count=groups,
        precision=lax.Precision.HIGHEST)


def reference_forward(x, p):
    c1 = x.shape[1]
    cc1 = p['b2'].shape[0]
    c_ = p['b6'].shape[0]
    z0 = ((0, 0), (0, 0))
    ph = ((2, 2), (0, 0))
    pw = ((0, 0), (2, 2))
    # GC1 (SiLU)
    t = _conv2d(x, p['a1s'].reshape(c1, 1, 1, 1), z0, groups=c1) + p['a1b'].reshape(1, c1, 1, 1)
    t = jax.nn.silu(t)
    y = jax.nn.silu(_conv2d(t, p['w2'].reshape(cc1, c1, 1, 1), z0) + p['b2'].reshape(1, cc1, 1, 1))
    u = jax.nn.silu(_conv2d(y, p['w3'].reshape(cc1, cc1, 5, 1), ph) + p['b3'].reshape(1, cc1, 1, 1))
    v = jax.nn.silu(_conv2d(u, p['w4'].reshape(3 * cc1, 1, 1, 5), pw, groups=cc1)
                    + p['b4'].reshape(1, 3 * cc1, 1, 1))
    z = jnp.concatenate([y, v], axis=1)
    # GC2 (Identity)
    t = _conv2d(z, p['a2s'].reshape(c_, 1, 1, 1), z0, groups=c_) + p['a2b'].reshape(1, c_, 1, 1)
    y2 = _conv2d(t, p['w6'].reshape(c_, c_, 1, 1), z0) + p['b6'].reshape(1, c_, 1, 1)
    u2 = _conv2d(y2, p['w7'].reshape(c_, c_, 5, 1), ph) + p['b7'].reshape(1, c_, 1, 1)
    v2 = _conv2d(u2, p['w8'].reshape(3 * c_, 1, 1, 5), pw, groups=c_) + p['b8'].reshape(1, 3 * c_, 1, 1)
    return jnp.concatenate([y2, v2], axis=1) + x


if __name__ == "__main__":
    key = jax.random.PRNGKey(0)
    kx, kp = jax.random.split(key)
    N, C, H, W = 2, 16, 16, 16          # c1 == c2 == 16 (s=1 bottleneck)
    x = jax.random.normal(kx, (N, C, H, W), jnp.float32)
    params = init_params(kp, C, C)

    out = jax.block_until_ready(sparse_ghost_bottleneck(x, params))
    ref = jax.block_until_ready(reference_forward(x, params))
    # Kernel uses default (fast) MXU precision + approx-reciprocal SiLU; the
    # reference uses f32 HIGHEST convs, so allow a modest tolerance.
    np.testing.assert_allclose(np.asarray(out), np.asarray(ref), rtol=1e-2, atol=1e-2)
    print("KERNEL_OK")
</pallas_src>

<mosaic_0001>
module attributes {stable_mosaic.version = 11 : i64} {
  func.func @kernel(%arg0: i32, %arg1: memref<16x512xf32, #tpu.memory_space<vmem>>, %arg2: memref<16x512xf32, #tpu.memory_space<vmem>>, %arg3: memref<16x512xf32, #tpu.memory_space<vmem>>, %arg4: memref<8x16xf32, #tpu.memory_space<vmem>>, %arg5: memref<8x512xf32, #tpu.memory_space<vmem>>, %arg6: memref<8x40xf32, #tpu.memory_space<vmem>>, %arg7: memref<8x512xf32, #tpu.memory_space<vmem>>, %arg8: memref<8x40xf32, #tpu.memory_space<vmem>>, %arg9: memref<8x512xf32, #tpu.memory_space<vmem>>, %arg10: memref<16x16xf32, #tpu.memory_space<vmem>>, %arg11: memref<16x512xf32, #tpu.memory_space<vmem>>, %arg12: memref<8x40xf32, #tpu.memory_space<vmem>>, %arg13: memref<8x512xf32, #tpu.memory_space<vmem>>, %arg14: memref<16x40xf32, #tpu.memory_space<vmem>>, %arg15: memref<16x512xf32, #tpu.memory_space<vmem>>, %arg16: memref<5x8x512xf32, #tpu.memory_space<vmem>>, %arg17: memref<5x8x512xf32, #tpu.memory_space<vmem>>, %arg18: memref<16x512xf32, #tpu.memory_space<vmem>>, %arg19: memref<40x512xf32, #tpu.memory_space<vmem>>, %arg20: memref<16x512xf32, #tpu.memory_space<vmem>>) attributes {dimension_semantics = [#tpu.dimension_semantics<parallel>], iteration_bounds = array<i64: 1>, scalar_prefetch = 0 : i64, scratch_operands = 2 : i64, tpu.core_type = #tpu.core_type<tc>, window_params = [{transform_indices = @transform_0, window_bounds = array<i64: 16, 512>}, {pipeline_mode = #tpu.pipeline_mode<synchronous>, transform_indices = @transform_1, window_bounds = array<i64: 16, 512>}, {pipeline_mode = #tpu.pipeline_mode<synchronous>, transform_indices = @transform_2, window_bounds = array<i64: 16, 512>}, {pipeline_mode = #tpu.pipeline_mode<synchronous>, transform_indices = @transform_3, window_bounds = array<i64: 8, 16>}, {pipeline_mode = #tpu.pipeline_mode<synchronous>, transform_indices = @transform_4, window_bounds = array<i64: 8, 512>}, {pipeline_mode = #tpu.pipeline_mode<synchronous>, transform_indices = @transform_5, window_bounds = array<i64: 8, 40>}, {pipeline_mode = #tpu.pipeline_mode<synchronous>, transform_indices = @transform_6, window_bounds = array<i64: 8, 512>}, {pipeline_mode = #tpu.pipeline_mode<synchronous>, transform_indices = @transform_7, window_bounds = array<i64: 8, 40>}, {pipeline_mode = #tpu.pipeline_mode<synchronous>, transform_indices = @transform_8, window_bounds = array<i64: 8, 512>}, {pipeline_mode = #tpu.pipeline_mode<synchronous>, transform_indices = @transform_9, window_bounds = array<i64: 16, 16>}, {pipeline_mode = #tpu.pipeline_mode<synchronous>, transform_indices = @transform_10, window_bounds = array<i64: 16, 512>}, {pipeline_mode = #tpu.pipeline_mode<synchronous>, transform_indices = @transform_11, window_bounds = array<i64: 8, 40>}, {pipeline_mode = #tpu.pipeline_mode<synchronous>, transform_indices = @transform_12, window_bounds = array<i64: 8, 512>}, {pipeline_mode = #tpu.pipeline_mode<synchronous>, transform_indices = @transform_13, window_bounds = array<i64: 16, 40>}, {pipeline_mode = #tpu.pipeline_mode<synchronous>, transform_indices = @transform_14, window_bounds = array<i64: 16, 512>}, {pipeline_mode = #tpu.pipeline_mode<synchronous>, transform_indices = @transform_15, window_bounds = array<i64: 5, 8, 512>}, {pipeline_mode = #tpu.pipeline_mode<synchronous>, transform_indices = @transform_16, window_bounds = array<i64: 5, 8, 512>}, {transform_indices = @transform_17, window_bounds = array<i64: 16, 512>}]} {
    %c0 = arith.constant 0 : index
    %c0_0 = arith.constant 0 : index
    %0 = vector.load %arg1[%c0, %c0_0] : memref<16x512xf32, #tpu.memory_space<vmem>>, vector<16x512xf32>
    %c0_1 = arith.constant 0 : index
    %c0_2 = arith.constant 0 : index
    %1 = vector.load %arg2[%c0_1, %c0_2] : memref<16x512xf32, #tpu.memory_space<vmem>>, vector<16x512xf32>
    %2 = arith.mulf %0, %1 : vector<16x512xf32>
    %c0_3 = arith.constant 0 : index
    %c0_4 = arith.constant 0 : index
    %3 = vector.load %arg3[%c0_3, %c0_4] : memref<16x512xf32, #tpu.memory_space<vmem>>, vector<16x512xf32>
    %4 = arith.addf %2, %3 : vector<16x512xf32>
    %cst = arith.constant 0.000000e+00 : f32
    %5 = vector.broadcast %cst : f32 to vector<16x512xf32>
    %6 = arith.subf %5, %4 : vector<16x512xf32>
    %7 = math.exp %6 : vector<16x512xf32>
    %cst_5 = arith.constant 1.000000e+00 : f32
    %8 = vector.broadcast %cst_5 : f32 to vector<16x512xf32>
    %9 = arith.addf %8, %7 : vector<16x512xf32>
    %10 = tpu.reciprocal %9 {approx = true} : vector<16x512xf32> -> vector<16x512xf32>
    %11 = arith.mulf %4, %10 : vector<16x512xf32>
    %c0_6 = arith.constant 0 : index
    %c0_7 = arith.constant 0 : index
    %12 = vector.load %arg4[%c0_6, %c0_7] : memref<8x16xf32, #tpu.memory_space<vmem>>, vector<8x16xf32>
    %cst_8 = arith.constant dense<0.000000e+00> : vector<8x512xf32>
    %13 = tpu.matmul %12, %11, %cst_8 {dimension_numbers = #tpu.dot_dimension_numbers<[1], [0], [0], [1], [0, 0, 1, 1], [], []>} : vector<8x16xf32>, vector<16x512xf32>, vector<8x512xf32> -> vector<8x512xf32>
    %c0_9 = arith.constant 0 : index
    %c0_10 = arith.constant 0 : index
    %14 = vector.load %arg5[%c0_9, %c0_10] : memref<8x512xf32, #tpu.memory_space<vmem>>, vector<8x512xf32>
    %15 = arith.addf %13, %14 : vector<8x512xf32>
    %cst_11 = arith.constant 0.000000e+00 : f32
    %16 = vector.broadcast %cst_11 : f32 to vector<8x512xf32>
    %17 = arith.subf %16, %15 : vector<8x512xf32>
    %18 = math.exp %17 : vector<8x512xf32>
    %cst_12 = arith.constant 1.000000e+00 : f32
    %19 = vector.broadcast %cst_12 : f32 to vector<8x512xf32>
    %20 = arith.addf %19, %18 : vector<8x512xf32>
    %21 = tpu.reciprocal %20 {approx = true} : vector<8x512xf32> -> vector<8x512xf32>
    %22 = arith.mulf %15, %21 : vector<8x512xf32>
    %c0_13 = arith.constant 0 : index
    %c0_14 = arith.constant 0 : index
    %23 = vector.load %arg20[%c0_13, %c0_14] : memref<16x512xf32, #tpu.memory_space<vmem>>, vector<8x512xf32>
    tpu.vector_store %arg20[%c0_13, %c0_14], %22 {strides = array<i32>} : memref<16x512xf32, #tpu.memory_space<vmem>>, vector<8x512xf32>,
    %c0_15 = arith.constant 0 : index
    %c0_16 = arith.constant 0 : index
    %c0_17 = arith.constant 0 : index
    %24 = vector.load %arg16[%c0_15, %c0_16, %c0_17] : memref<5x8x512xf32, #tpu.memory_space<vmem>>, vector<1x8x512xf32>
    %25 = vector.shape_cast %24 : vector<1x8x512xf32> to vector<8x512xf32>
    %c32_i32 = arith.constant 32 : i32
    %26 = tpu.dynamic_rotate %22 by %c32_i32 dim 1 : vector<8x512xf32>, i32 -> vector<8x512xf32>
    %27 = arith.mulf %26, %25 : vector<8x512xf32>
    %c0_18 = arith.constant 0 : index
    %c0_19 = arith.constant 0 : index
    %28 = vector.load %arg19[%c0_18, %c0_19] : memref<40x512xf32, #tpu.memory_space<vmem>>, vector<8x512xf32>
    tpu.vector_store %arg19[%c0_18, %c0_19], %27 {strides = array<i32>} : memref<40x512xf32, #tpu.memory_space<vmem>>, vector<8x512xf32>,
    %c1 = arith.constant 1 : index
    %c0_20 = arith.constant 0 : index
    %c0_21 = arith.constant 0 : index
    %29 = vector.load %arg16[%c1, %c0_20, %c0_21] : memref<5x8x512xf32, #tpu.memory_space<vmem>>, vector<1x8x512xf32>
    %30 = vector.shape_cast %29 : vector<1x8x512xf32> to vector<8x512xf32>
    %c16_i32 = arith.constant 16 : i32
    %31 = tpu.dynamic_rotate %22 by %c16_i32 dim 1 : vector<8x512xf32>, i32 -> vector<8x512xf32>
    %32 = arith.mulf %31, %30 : vector<8x512xf32>
    %c8 = arith.constant 8 : index
    %c0_22 = arith.constant 0 : index
    %33 = vector.load %arg19[%c8, %c0_22] : memref<40x512xf32, #tpu.memory_space<vmem>>, vector<8x512xf32>
    tpu.vector_store %arg19[%c8, %c0_22], %32 {strides = array<i32>} : memref<40x512xf32, #tpu.memory_space<vmem>>, vector<8x512xf32>,
    %c16 = arith.constant 16 : index
    %c0_23 = arith.constant 0 : index
    %34 = vector.load %arg19[%c16, %c0_23] : memref<40x512xf32, #tpu.memory_space<vmem>>, vector<8x512xf32>
    tpu.vector_store %arg19[%c16, %c0_23], %22 {strides = array<i32>} : memref<40x512xf32, #tpu.memory_space<vmem>>, vector<8x512xf32>,
    %c3 = arith.constant 3 : index
    %c0_24 = arith.constant 0 : index
    %c0_25 = arith.constant 0 : index
    %35 = vector.load %arg16[%c3, %c0_24, %c0_25] : memref<5x8x512xf32, #tpu.memory_space<vmem>>, vector<1x8x512xf32>
    %36 = vector.shape_cast %35 : vector<1x8x512xf32> to vector<8x512xf32>
    %c496_i32 = arith.constant 496 : i32
    %37 = tpu.dynamic_rotate %22 by %c496_i32 dim 1 : vector<8x512xf32>, i32 -> vector<8x512xf32>
    %38 = arith.mulf %37, %36 : vector<8x512xf32>
    %c24 = arith.constant 24 : index
    %c0_26 = arith.constant 0 : index
    %39 = vector.load %arg19[%c24, %c0_26] : memref<40x512xf32, #tpu.memory_space<vmem>>, vector<8x512xf32>
    tpu.vector_store %arg19[%c24, %c0_26], %38 {strides = array<i32>} : memref<40x512xf32, #tpu.memory_space<vmem>>, vector<8x512xf32>,
    %c4 = arith.constant 4 : index
    %c0_27 = arith.constant 0 : index
    %c0_28 = arith.constant 0 : index
    %40 = vector.load %arg16[%c4, %c0_27, %c0_28] : memref<5x8x512xf32, #tpu.memory_space<vmem>>, vector<1x8x512xf32>
    %41 = vector.shape_cast %40 : vector<1x8x512xf32> to vector<8x512xf32>
    %c480_i32 = arith.constant 480 : i32
    %42 = tpu.dynamic_rotate %22 by %c480_i32 dim 1 : vector<8x512xf32>, i32 -> vector<8x512xf32>
    %43 = arith.mulf %42, %41 : vector<8x512xf32>
    %c32 = arith.constant 32 : index
    %c0_29 = arith.constant 0 : index
    %44 = vector.load %arg19[%c32, %c0_29] : memref<40x512xf32, #tpu.memory_space<vmem>>, vector<8x512xf32>
    tpu.vector_store %arg19[%c32, %c0_29], %43 {strides = array<i32>} : memref<40x512xf32, #tpu.memory_space<vmem>>, vector<8x512xf32>,
    %c0_30 = arith.constant 0 : index
    %c0_31 = arith.constant 0 : index
    %45 = vector.load %arg6[%c0_30, %c0_31] : memref<8x40xf32, #tpu.memory_space<vmem>>, vector<8x40xf32>
    %c0_32 = arith.constant 0 : index
    %c0_33 = arith.constant 0 : index
    %46 = vector.load %arg19[%c0_32, %c0_33] : memref<40x512xf32, #tpu.memory_space<vmem>>, vector<40x512xf32>
    %cst_34 = arith.constant dense<0.000000e+00> : vector<8x512xf32>
    %47 = tpu.matmul %45, %46, %cst_34 {dimension_numbers = #tpu.dot_dimension_numbers<[1], [0], [0], [1], [0, 0, 1, 1], [], []>} : vector<8x40xf32>, vector<40x512xf32>, vector<8x512xf32> -> vector<8x512xf32>
    %c0_35 = arith.constant 0 : index
    %c0_36 = arith.constant 0 : index
    %48 = vector.load %arg7[%c0_35, %c0_36] : memref<8x512xf32, #tpu.memory_space<vmem>>, vector<8x512xf32>
    %49 = arith.addf %47, %48 : vector<8x512xf32>
    %cst_37 = arith.constant 0.000000e+00 : f32
    %50 = vector.broadcast %cst_37 : f32 to vector<8x512xf32>
    %51 = arith.subf %50, %49 : vector<8x512xf32>
    %52 = math.exp %51 : vector<8x512xf32>
    %cst_38 = arith.constant 1.000000e+00 : f32
    %53 = vector.broadcast %cst_38 : f32 to vector<8x512xf32>
    %54 = arith.addf %53, %52 : vector<8x512xf32>
    %55 = tpu.reciprocal %54 {approx = true} : vector<8x512xf32> -> vector<8x512xf32>
    %56 = arith.mulf %49, %55 : vector<8x512xf32>
    %c0_39 = arith.constant 0 : index
    %c0_40 = arith.constant 0 : index
    %c0_41 = arith.constant 0 : index
    %57 = vector.load %arg17[%c0_39, %c0_40, %c0_41] : memref<5x8x512xf32, #tpu.memory_space<vmem>>, vector<1x8x512xf32>
    %58 = vector.shape_cast %57 : vector<1x8x512xf32> to vector<8x512xf32>
    %c2_i32 = arith.constant 2 : i32
    %59 = tpu.dynamic_rotate %56 by %c2_i32 dim 1 : vector<8x512xf32>, i32 -> vector<8x512xf32>
    %60 = arith.mulf %59, %58 : vector<8x512xf32>
    %c0_42 = arith.constant 0 : index
    %c0_43 = arith.constant 0 : index
    %61 = vector.load %arg19[%c0_42, %c0_43] : memref<40x512xf32, #tpu.memory_space<vmem>>, vector<8x512xf32>
    tpu.vector_store %arg19[%c0_42, %c0_43], %60 {strides = array<i32>} : memref<40x512xf32, #tpu.memory_space<vmem>>, vector<8x512xf32>,
    %c1_44 = arith.constant 1 : index
    %c0_45 = arith.constant 0 : index
    %c0_46 = arith.constant 0 : index
    %62 = vector.load %arg17[%c1_44, %c0_45, %c0_46] : memref<5x8x512xf32, #tpu.memory_space<vmem>>, vector<1x8x512xf32>
    %63 = vector.shape_cast %62 : vector<1x8x512xf32> to vector<8x512xf32>
    %c1_i32 = arith.constant 1 : i32
    %64 = tpu.dynamic_rotate %56 by %c1_i32 dim 1 : vector<8x512xf32>, i32 -> vector<8x512xf32>
    %65 = arith.mulf %64, %63 : vector<8x512xf32>
    %c8_47 = arith.constant 8 : index
    %c0_48 = arith.constant 0 : index
    %66 = vector.load %arg19[%c8_47, %c0_48] : memref<40x512xf32, #tpu.memory_space<vmem>>, vector<8x512xf32>
    tpu.vector_store %arg19[%c8_47, %c0_48], %65 {strides = array<i32>} : memref<40x512xf32, #tpu.memory_space<vmem>>, vector<8x512xf32>,
    %c16_49 = arith.constant 16 : index
    %c0_50 = arith.constant 0 : index
    %67 = vector.load %arg19[%c16_49, %c0_50] : memref<40x512xf32, #tpu.memory_space<vmem>>, vector<8x512xf32>
    tpu.vector_store %arg19[%c16_49, %c0_50], %56 {strides = array<i32>} : memref<40x512xf32, #tpu.memory_space<vmem>>, vector<8x512xf32>,
    %c3_51 = arith.constant 3 : index
    %c0_52 = arith.constant 0 : index
    %c0_53 = arith.constant 0 : index
    %68 = vector.load %arg17[%c3_51, %c0_52, %c0_53] : memref<5x8x512xf32, #tpu.memory_space<vmem>>, vector<1x8x512xf32>
    %69 = vector.shape_cast %68 : vector<1x8x512xf32> to vector<8x512xf32>
    %c511_i32 = arith.constant 511 : i32
    %70 = tpu.dynamic_rotate %56 by %c511_i32 dim 1 : vector<8x512xf32>, i32 -> vector<8x512xf32>
    %71 = arith.mulf %70, %69 : vector<8x512xf32>
    %c24_54 = arith.constant 24 : index
    %c0_55 = arith.constant 0 : index
    %72 = vector.load %arg19[%c24_54, %c0_55] : memref<40x512xf32, #tpu.memory_space<vmem>>, vector<8x512xf32>
    tpu.vector_store %arg19[%c24_54, %c0_55], %71 {strides = array<i32>} : memref<40x512xf32, #tpu.memory_space<vmem>>, vector<8x512xf32>,
    %c4_56 = arith.constant 4 : index
    %c0_57 = arith.constant 0 : index
    %c0_58 = arith.constant 0 : index
    %73 = vector.load %arg17[%c4_56, %c0_57, %c0_58] : memref<5x8x512xf32, #tpu.memory_space<vmem>>, vector<1x8x512xf32>
    %74 = vector.shape_cast %73 : vector<1x8x512xf32> to vector<8x512xf32>
    %c510_i32 = arith.constant 510 : i32
    %75 = tpu.dynamic_rotate %56 by %c510_i32 dim 1 : vector<8x512xf32>, i32 -> vector<8x512xf32>
    %76 = arith.mulf %75, %74 : vector<8x512xf32>
    %c32_59 = arith.constant 32 : index
    %c0_60 = arith.constant 0 : index
    %77 = vector.load %arg19[%c32_59, %c0_60] : memref<40x512xf32, #tpu.memory_space<vmem>>, vector<8x512xf32>
    tpu.vector_store %arg19[%c32_59, %c0_60], %76 {strides = array<i32>} : memref<40x512xf32, #tpu.memory_space<vmem>>, vector<8x512xf32>,
    %c0_61 = arith.constant 0 : index
    %c0_62 = arith.constant 0 : index
    %78 = vector.load %arg8[%c0_61, %c0_62] : memref<8x40xf32, #tpu.memory_space<vmem>>, vector<8x40xf32>
    %c0_63 = arith.constant 0 : index
    %c0_64 = arith.constant 0 : index
    %79 = vector.load %arg19[%c0_63, %c0_64] : memref<40x512xf32, #tpu.memory_space<vmem>>, vector<40x512xf32>
    %cst_65 = arith.constant dense<0.000000e+00> : vector<8x512xf32>
    %80 = tpu.matmul %78, %79, %cst_65 {dimension_numbers = #tpu.dot_dimension_numbers<[1], [0], [0], [1], [0, 0, 1, 1], [], []>} : vector<8x40xf32>, vector<40x512xf32>, vector<8x512xf32> -> vector<8x512xf32>
    %c0_66 = arith.constant 0 : index
    %c0_67 = arith.constant 0 : index
    %81 = vector.load %arg9[%c0_66, %c0_67] : memref<8x512xf32, #tpu.memory_space<vmem>>, vector<8x512xf32>
    %82 = arith.addf %80, %81 : vector<8x512xf32>
    %cst_68 = arith.constant 0.000000e+00 : f32
    %83 = vector.broadcast %cst_68 : f32 to vector<8x512xf32>
    %84 = arith.subf %83, %82 : vector<8x512xf32>
    %85 = math.exp %84 : vector<8x512xf32>
    %cst_69 = arith.constant 1.000000e+00 : f32
    %86 = vector.broadcast %cst_69 : f32 to vector<8x512xf32>
    %87 = arith.addf %86, %85 : vector<8x512xf32>
    %88 = tpu.reciprocal %87 {approx = true} : vector<8x512xf32> -> vector<8x512xf32>
    %89 = arith.mulf %82, %88 : vector<8x512xf32>
    %c8_70 = arith.constant 8 : index
    %c0_71 = arith.constant 0 : index
    %90 = vector.load %arg20[%c8_70, %c0_71] : memref<16x512xf32, #tpu.memory_space<vmem>>, vector<8x512xf32>
    tpu.vector_store %arg20[%c8_70, %c0_71], %89 {strides = array<i32>} : memref<16x512xf32, #tpu.memory_space<vmem>>, vector<8x512xf32>,
    %c0_72 = arith.constant 0 : index
    %c0_73 = arith.constant 0 : index
    %91 = vector.load %arg10[%c0_72, %c0_73] : memref<16x16xf32, #tpu.memory_space<vmem>>, vector<16x16xf32>
    %c0_74 = arith.constant 0 : index
    %c0_75 = arith.constant 0 : index
    %92 = vector.load %arg20[%c0_74, %c0_75] : memref<16x512xf32, #tpu.memory_space<vmem>>, vector<16x512xf32>
    %cst_76 = arith.constant dense<0.000000e+00> : vector<16x512xf32>
    %93 = tpu.matmul %91, %92, %cst_76 {dimension_numbers = #tpu.dot_dimension_numbers<[1], [0], [0], [1], [0, 0, 1, 1], [], []>} : vector<16x16xf32>, vector<16x512xf32>, vector<16x512xf32> -> vector<16x512xf32>
    %c0_77 = arith.constant 0 : index
    %c0_78 = arith.constant 0 : index
    %94 = vector.load %arg11[%c0_77, %c0_78] : memref<16x512xf32, #tpu.memory_space<vmem>>, vector<16x512xf32>
    %95 = arith.addf %93, %94 : vector<16x512xf32>
    %96 = vector.extract_strided_slice %95 {offsets = [0, 0], sizes = [8, 512], strides = [1, 1]} : vector<16x512xf32> to vector<8x512xf32>
    %c0_79 = arith.constant 0 : index
    %c0_80 = arith.constant 0 : index
    %c0_81 = arith.constant 0 : index
    %97 = vector.load %arg16[%c0_79, %c0_80, %c0_81] : memref<5x8x512xf32, #tpu.memory_space<vmem>>, vector<1x8x512xf32>
    %98 = vector.shape_cast %97 : vector<1x8x512xf32> to vector<8x512xf32>
    %c32_i32_82 = arith.constant 32 : i32
    %99 = tpu.dynamic_rotate %96 by %c32_i32_82 dim 1 : vector<8x512xf32>, i32 -> vector<8x512xf32>
    %100 = arith.mulf %99, %98 : vector<8x512xf32>
    %c0_83 = arith.constant 0 : index
    %c0_84 = arith.constant 0 : index
    %101 = vector.load %arg19[%c0_83, %c0_84] : memref<40x512xf32, #tpu.memory_space<vmem>>, vector<8x512xf32>
    tpu.vector_store %arg19[%c0_83, %c0_84], %100 {strides = array<i32>} : memref<40x512xf32, #tpu.memory_space<vmem>>, vector<8x512xf32>,
    %c1_85 = arith.constant 1 : index
    %c0_86 = arith.constant 0 : index
    %c0_87 = arith.constant 0 : index
    %102 = vector.load %arg16[%c1_85, %c0_86, %c0_87] : memref<5x8x512xf32, #tpu.memory_space<vmem>>, vector<1x8x512xf32>
    %103 = vector.shape_cast %102 : vector<1x8x512xf32> to vector<8x512xf32>
    %c16_i32_88 = arith.constant 16 : i32
    %104 = tpu.dynamic_rotate %96 by %c16_i32_88 dim 1 : vector<8x512xf32>, i32 -> vector<8x512xf32>
    %105 = arith.mulf %104, %103 : vector<8x512xf32>
    %c8_89 = arith.constant 8 : index
    %c0_90 = arith.constant 0 : index
    %106 = vector.load %arg19[%c8_89, %c0_90] : memref<40x512xf32, #tpu.memory_space<vmem>>, vector<8x512xf32>
    tpu.vector_store %arg19[%c8_89, %c0_90], %105 {strides = array<i32>} : memref<40x512xf32, #tpu.memory_space<vmem>>, vector<8x512xf32>,
    %c16_91 = arith.constant 16 : index
    %c0_92 = arith.constant 0 : index
    %107 = vector.load %arg19[%c16_91, %c0_92] : memref<40x512xf32, #tpu.memory_space<vmem>>, vector<8x512xf32>
    tpu.vector_store %arg19[%c16_91, %c0_92], %96 {strides = array<i32>} : memref<40x512xf32, #tpu.memory_space<vmem>>, vector<8x512xf32>,
    %c3_93 = arith.constant 3 : index
    %c0_94 = arith.constant 0 : index
    %c0_95 = arith.constant 0 : index
    %108 = vector.load %arg16[%c3_93, %c0_94, %c0_95] : memref<5x8x512xf32, #tpu.memory_space<vmem>>, vector<1x8x512xf32>
    %109 = vector.shape_cast %108 : vector<1x8x512xf32> to vector<8x512xf32>
    %c496_i32_96 = arith.constant 496 : i32
    %110 = tpu.dynamic_rotate %96 by %c496_i32_96 dim 1 : vector<8x512xf32>, i32 -> vector<8x512xf32>
    %111 = arith.mulf %110, %109 : vector<8x512xf32>
    %c24_97 = arith.constant 24 : index
    %c0_98 = arith.constant 0 : index
    %112 = vector.load %arg19[%c24_97, %c0_98] : memref<40x512xf32, #tpu.memory_space<vmem>>, vector<8x512xf32>
    tpu.vector_store %arg19[%c24_97, %c0_98], %111 {strides = array<i32>} : memref<40x512xf32, #tpu.memory_space<vmem>>, vector<8x512xf32>,
    %c4_99 = arith.constant 4 : index
    %c0_100 = arith.constant 0 : index
    %c0_101 = arith.constant 0 : index
    %113 = vector.load %arg16[%c4_99, %c0_100, %c0_101] : memref<5x8x512xf32, #tpu.memory_space<vmem>>, vector<1x8x512xf32>
    %114 = vector.shape_cast %113 : vector<1x8x512xf32> to vector<8x512xf32>
    %c480_i32_102 = arith.constant 480 : i32
    %115 = tpu.dynamic_rotate %96 by %c480_i32_102 dim 1 : vector<8x512xf32>, i32 -> vector<8x512xf32>
    %116 = arith.mulf %115, %114 : vector<8x512xf32>
    %c32_103 = arith.constant 32 : index
    %c0_104 = arith.constant 0 : index
    %117 = vector.load %arg19[%c32_103, %c0_104] : memref<40x512xf32, #tpu.memory_space<vmem>>, vector<8x512xf32>
    tpu.vector_store %arg19[%c32_103, %c0_104], %116 {strides = array<i32>} : memref<40x512xf32, #tpu.memory_space<vmem>>, vector<8x512xf32>,
    %c0_105 = arith.constant 0 : index
    %c0_106 = arith.constant 0 : index
    %118 = vector.load %arg12[%c0_105, %c0_106] : memref<8x40xf32, #tpu.memory_space<vmem>>, vector<8x40xf32>
    %c0_107 = arith.constant 0 : index
    %c0_108 = arith.constant 0 : index
    %119 = vector.load %arg19[%c0_107, %c0_108] : memref<40x512xf32, #tpu.memory_space<vmem>>, vector<40x512xf32>
    %cst_109 = arith.constant dense<0.000000e+00> : vector<8x512xf32>
    %120 = tpu.matmul %118, %119, %cst_109 {dimension_numbers = #tpu.dot_dimension_numbers<[1], [0], [0], [1], [0, 0, 1, 1], [], []>} : vector<8x40xf32>, vector<40x512xf32>, vector<8x512xf32> -> vector<8x512xf32>
    %c0_110 = arith.constant 0 : index
    %c0_111 = arith.constant 0 : index
    %121 = vector.load %arg13[%c0_110, %c0_111] : memref<8x512xf32, #tpu.memory_space<vmem>>, vector<8x512xf32>
    %122 = arith.addf %120, %121 : vector<8x512xf32>
    %c0_112 = arith.constant 0 : index
    %c0_113 = arith.constant 0 : index
    %c0_114 = arith.constant 0 : index
    %123 = vector.load %arg17[%c0_112, %c0_113, %c0_114] : memref<5x8x512xf32, #tpu.memory_space<vmem>>, vector<1x8x512xf32>
    %124 = vector.shape_cast %123 : vector<1x8x512xf32> to vector<8x512xf32>
    %c2_i32_115 = arith.constant 2 : i32
    %125 = tpu.dynamic_rotate %122 by %c2_i32_115 dim 1 : vector<8x512xf32>, i32 -> vector<8x512xf32>
    %126 = arith.mulf %125, %124 : vector<8x512xf32>
    %c0_116 = arith.constant 0 : index
    %c0_117 = arith.constant 0 : index
    %127 = vector.load %arg19[%c0_116, %c0_117] : memref<40x512xf32, #tpu.memory_space<vmem>>, vector<8x512xf32>
    tpu.vector_store %arg19[%c0_116, %c0_117], %126 {strides = array<i32>} : memref<40x512xf32, #tpu.memory_space<vmem>>, vector<8x512xf32>,
    %c1_118 = arith.constant 1 : index
    %c0_119 = arith.constant 0 : index
    %c0_120 = arith.constant 0 : index
    %128 = vector.load %arg17[%c1_118, %c0_119, %c0_120] : memref<5x8x512xf32, #tpu.memory_space<vmem>>, vector<1x8x512xf32>
    %129 = vector.shape_cast %128 : vector<1x8x512xf32> to vector<8x512xf32>
    %c1_i32_121 = arith.constant 1 : i32
    %130 = tpu.dynamic_rotate %122 by %c1_i32_121 dim 1 : vector<8x512xf32>, i32 -> vector<8x512xf32>
    %131 = arith.mulf %130, %129 : vector<8x512xf32>
    %c8_122 = arith.constant 8 : index
    %c0_123 = arith.constant 0 : index
    %132 = vector.load %arg19[%c8_122, %c0_123] : memref<40x512xf32, #tpu.memory_space<vmem>>, vector<8x512xf32>
    tpu.vector_store %arg19[%c8_122, %c0_123], %131 {strides = array<i32>} : memref<40x512xf32, #tpu.memory_space<vmem>>, vector<8x512xf32>,
    %c16_124 = arith.constant 16 : index
    %c0_125 = arith.constant 0 : index
    %133 = vector.load %arg19[%c16_124, %c0_125] : memref<40x512xf32, #tpu.memory_space<vmem>>, vector<8x512xf32>
    tpu.vector_store %arg19[%c16_124, %c0_125], %122 {strides = array<i32>} : memref<40x512xf32, #tpu.memory_space<vmem>>, vector<8x512xf32>,
    %c3_126 = arith.constant 3 : index
    %c0_127 = arith.constant 0 : index
    %c0_128 = arith.constant 0 : index
    %134 = vector.load %arg17[%c3_126, %c0_127, %c0_128] : memref<5x8x512xf32, #tpu.memory_space<vmem>>, vector<1x8x512xf32>
    %135 = vector.shape_cast %134 : vector<1x8x512xf32> to vector<8x512xf32>
    %c511_i32_129 = arith.constant 511 : i32
    %136 = tpu.dynamic_rotate %122 by %c511_i32_129 dim 1 : vector<8x512xf32>, i32 -> vector<8x512xf32>
    %137 = arith.mulf %136, %135 : vector<8x512xf32>
    %c24_130 = arith.constant 24 : index
    %c0_131 = arith.constant 0 : index
    %138 = vector.load %arg19[%c24_130, %c0_131] : memref<40x512xf32, #tpu.memory_space<vmem>>, vector<8x512xf32>
    tpu.vector_store %arg19[%c24_130, %c0_131], %137 {strides = array<i32>} : memref<40x512xf32, #tpu.memory_space<vmem>>, vector<8x512xf32>,
    %c4_132 = arith.constant 4 : index
    %c0_133 = arith.constant 0 : index
    %c0_134 = arith.constant 0 : index
    %139 = vector.load %arg17[%c4_132, %c0_133, %c0_134] : memref<5x8x512xf32, #tpu.memory_space<vmem>>, vector<1x8x512xf32>
    %140 = vector.shape_cast %139 : vector<1x8x512xf32> to vector<8x512xf32>
    %c510_i32_135 = arith.constant 510 : i32
    %141 = tpu.dynamic_rotate %122 by %c510_i32_135 dim 1 : vector<8x512xf32>, i32 -> vector<8x512xf32>
    %142 = arith.mulf %141, %140 : vector<8x512xf32>
    %c32_136 = arith.constant 32 : index
    %c0_137 = arith.constant 0 : index
    %143 = vector.load %arg19[%c32_136, %c0_137] : memref<40x512xf32, #tpu.memory_space<vmem>>, vector<8x512xf32>
    tpu.vector_store %arg19[%c32_136, %c0_137], %142 {strides = array<i32>} : memref<40x512xf32, #tpu.memory_space<vmem>>, vector<8x512xf32>,
    %c0_138 = arith.constant 0 : index
    %c0_139 = arith.constant 0 : index
    %144 = vector.load %arg14[%c0_138, %c0_139] : memref<16x40xf32, #tpu.memory_space<vmem>>, vector<16x40xf32>
    %c0_140 = arith.constant 0 : index
    %c0_141 = arith.constant 0 : index
    %145 = vector.load %arg19[%c0_140, %c0_141] : memref<40x512xf32, #tpu.memory_space<vmem>>, vector<40x512xf32>
    %cst_142 = arith.constant dense<0.000000e+00> : vector<16x512xf32>
    %146 = tpu.matmul %144, %145, %cst_142 {dimension_numbers = #tpu.dot_dimension_numbers<[1], [0], [0], [1], [0, 0, 1, 1], [], []>} : vector<16x40xf32>, vector<40x512xf32>, vector<16x512xf32> -> vector<16x512xf32>
    %c0_143 = arith.constant 0 : index
    %c0_144 = arith.constant 0 : index
    %147 = vector.load %arg15[%c0_143, %c0_144] : memref<16x512xf32, #tpu.memory_space<vmem>>, vector<16x512xf32>
    %148 = arith.addf %146, %147 : vector<16x512xf32>
    %149 = arith.addf %95, %148 : vector<16x512xf32>
    %c0_145 = arith.constant 0 : index
    %c0_146 = arith.constant 0 : index
    %150 = vector.load %arg1[%c0_145, %c0_146] : memref<16x512xf32, #tpu.memory_space<vmem>>, vector<16x512xf32>
    %151 = arith.addf %149, %150 : vector<16x512xf32>
    %c0_147 = arith.constant 0 : index
    %c0_148 = arith.constant 0 : index
    %152 = vector.load %arg18[%c0_147, %c0_148] : memref<16x512xf32, #tpu.memory_space<vmem>>, vector<16x512xf32>
    tpu.vector_store %arg18[%c0_147, %c0_148], %151 {strides = array<i32>} : memref<16x512xf32, #tpu.memory_space<vmem>>, vector<16x512xf32>,
    return
  }
  func.func @transform_0(%arg0: i32) -> (i32, i32) {
    %c0_i32 = arith.constant 0 : i32
    %c0_i32_0 = arith.constant 0 : i32
    return %c0_i32, %arg0 : i32, i32
  }
  func.func @transform_1(%arg0: i32) -> (i32, i32) {
    %c0_i32 = arith.constant 0 : i32
    %c0_i32_0 = arith.constant 0 : i32
    %c0_i32_1 = arith.constant 0 : i32
    return %c0_i32, %c0_i32_0 : i32, i32
  }
  func.func @transform_2(%arg0: i32) -> (i32, i32) {
    %c0_i32 = arith.constant 0 : i32
    %c0_i32_0 = arith.constant 0 : i32
    %c0_i32_1 = arith.constant 0 : i32
    return %c0_i32, %c0_i32_0 : i32, i32
  }
  func.func @transform_3(%arg0: i32) -> (i32, i32) {
    %c0_i32 = arith.constant 0 : i32
    %c0_i32_0 = arith.constant 0 : i32
    %c0_i32_1 = arith.constant 0 : i32
    return %c0_i32, %c0_i32_0 : i32, i32
  }
  func.func @transform_4(%arg0: i32) -> (i32, i32) {
    %c0_i32 = arith.constant 0 : i32
    %c0_i32_0 = arith.constant 0 : i32
    %c0_i32_1 = arith.constant 0 : i32
    return %c0_i32, %c0_i32_0 : i32, i32
  }
  func.func @transform_5(%arg0: i32) -> (i32, i32) {
    %c0_i32 = arith.constant 0 : i32
    %c0_i32_0 = arith.constant 0 : i32
    %c0_i32_1 = arith.constant 0 : i32
    return %c0_i32, %c0_i32_0 : i32, i32
  }
  func.func @transform_6(%arg0: i32) -> (i32, i32) {
    %c0_i32 = arith.constant 0 : i32
    %c0_i32_0 = arith.constant 0 : i32
    %c0_i32_1 = arith.constant 0 : i32
    return %c0_i32, %c0_i32_0 : i32, i32
  }
  func.func @transform_7(%arg0: i32) -> (i32, i32) {
    %c0_i32 = arith.constant 0 : i32
    %c0_i32_0 = arith.constant 0 : i32
    %c0_i32_1 = arith.constant 0 : i32
    return %c0_i32, %c0_i32_0 : i32, i32
  }
  func.func @transform_8(%arg0: i32) -> (i32, i32) {
    %c0_i32 = arith.constant 0 : i32
    %c0_i32_0 = arith.constant 0 : i32
    %c0_i32_1 = arith.constant 0 : i32
    return %c0_i32, %c0_i32_0 : i32, i32
  }
  func.func @transform_9(%arg0: i32) -> (i32, i32) {
    %c0_i32 = arith.constant 0 : i32
    %c0_i32_0 = arith.constant 0 : i32
    %c0_i32_1 = arith.constant 0 : i32
    return %c0_i32, %c0_i32_0 : i32, i32
  }
  func.func @transform_10(%arg0: i32) -> (i32, i32) {
    %c0_i32 = arith.constant 0 : i32
    %c0_i32_0 = arith.constant 0 : i32
    %c0_i32_1 = arith.constant 0 : i32
    return %c0_i32, %c0_i32_0 : i32, i32
  }
  func.func @transform_11(%arg0: i32) -> (i32, i32) {
    %c0_i32 = arith.constant 0 : i32
    %c0_i32_0 = arith.constant 0 : i32
    %c0_i32_1 = arith.constant 0 : i32
    return %c0_i32, %c0_i32_0 : i32, i32
  }
  func.func @transform_12(%arg0: i32) -> (i32, i32) {
    %c0_i32 = arith.constant 0 : i32
    %c0_i32_0 = arith.constant 0 : i32
    %c0_i32_1 = arith.constant 0 : i32
    return %c0_i32, %c0_i32_0 : i32, i32
  }
  func.func @transform_13(%arg0: i32) -> (i32, i32) {
    %c0_i32 = arith.constant 0 : i32
    %c0_i32_0 = arith.constant 0 : i32
    %c0_i32_1 = arith.constant 0 : i32
    return %c0_i32, %c0_i32_0 : i32, i32
  }
  func.func @transform_14(%arg0: i32) -> (i32, i32) {
    %c0_i32 = arith.constant 0 : i32
    %c0_i32_0 = arith.constant 0 : i32
    %c0_i32_1 = arith.constant 0 : i32
    return %c0_i32, %c0_i32_0 : i32, i32
  }
  func.func @transform_15(%arg0: i32) -> (i32, i32, i32) {
    %c0_i32 = arith.constant 0 : i32
    %c0_i32_0 = arith.constant 0 : i32
    %c0_i32_1 = arith.constant 0 : i32
    %c0_i32_2 = arith.constant 0 : i32
    return %c0_i32, %c0_i32_0, %c0_i32_1 : i32, i32, i32
  }
  func.func @transform_16(%arg0: i32) -> (i32, i32, i32) {
    %c0_i32 = arith.constant 0 : i32
    %c0_i32_0 = arith.constant 0 : i32
    %c0_i32_1 = arith.constant 0 : i32
    %c0_i32_2 = arith.constant 0 : i32
    return %c0_i32, %c0_i32_0, %c0_i32_1 : i32, i32, i32
  }
  func.func @transform_17(%arg0: i32) -> (i32, i32) {
    %c0_i32 = arith.constant 0 : i32
    %c0_i32_0 = arith.constant 0 : i32
    return %c0_i32, %arg0 : i32, i32
  }
}

</mosaic_0001>

<llo_original>
// kernel: tpu_custom_call.1
$region0: #{tpu_custom_call.1}
  #allocation0 [shape = 'u32[]', space=smem, size = 0x4, offset = 0x4, fixed_abs, tag = 'smem constant byte address 0x4 - core index']
  #allocation1 [shape = 'u32[72,128]{1,0:T(1,128)}', space=vmem, size = 0x9000, scoped, tag = 'internal scratch']
  #allocation2 [shape = 'f32[40,512]{1,0:T(8,128)}', space=vmem, size = 0x14000, scoped, tag = 'scratch operand']
  #allocation3 [shape = 'f32[16,512]{1,0:T(8,128)}', space=vmem, size = 0x8000, scoped, tag = 'scratch operand']
  %s0 = inlined_call_operand.hbm [shape: f32[16,512], index: 0, kind: input, shape index: {}, may-alias: {0,17}]
  %s1 = inlined_call_operand.vmem [shape: f32[16,512], index: 1, kind: input, shape index: {}]
  %s2 = inlined_call_operand.vmem [shape: f32[16,512], index: 2, kind: input, shape index: {}]
  %s3 = inlined_call_operand.hbm [shape: f32[8,16], index: 3, kind: input, shape index: {}]
  %s4 = inlined_call_operand.hbm [shape: f32[8,512], index: 4, kind: input, shape index: {}]
  %s5 = inlined_call_operand.hbm [shape: f32[8,40], index: 5, kind: input, shape index: {}]
  %s6 = inlined_call_operand.hbm [shape: f32[8,512], index: 6, kind: input, shape index: {}]
  %s7 = inlined_call_operand.hbm [shape: f32[8,40], index: 7, kind: input, shape index: {}]
  %s8 = inlined_call_operand.hbm [shape: f32[8,512], index: 8, kind: input, shape index: {}]
  %s9 = inlined_call_operand.hbm [shape: f32[16,16], index: 9, kind: input, shape index: {}]
  %s10 = inlined_call_operand.hbm [shape: f32[16,512], index: 10, kind: input, shape index: {}]
  %s11 = inlined_call_operand.vmem [shape: f32[8,40], index: 11, kind: input, shape index: {}]
  %s12 = inlined_call_operand.hbm [shape: f32[8,512], index: 12, kind: input, shape index: {}]
  %s13 = inlined_call_operand.hbm [shape: f32[16,40], index: 13, kind: input, shape index: {}]
  %s14 = inlined_call_operand.hbm [shape: f32[16,512], index: 14, kind: input, shape index: {}]
  %s15 = inlined_call_operand.hbm [shape: f32[5,8,512], index: 15, kind: input, shape index: {}]
  %s16 = inlined_call_operand.hbm [shape: f32[5,8,512], index: 16, kind: input, shape index: {}]
  %s17 = inlined_call_operand.hbm [shape: f32[16,512], index: 17, kind: output, shape index: {}, may-alias: {0,17}]
  %s18 = sld [smem:[#allocation0]]
  $region134: #{tpu_custom_call.1} parent=0
    _
  %s20 = ssub.s32 1, %s18
  %s21 = scalar_select 0, %s20, %s18
  $region1: #{tpu_custom_call.1} parent=0
    #allocation4 [shape = 'u8[32768]{0}', space=vmem, size = 0x8000, scoped, tag = 'input window, operand 0, single buffered']
    #allocation5 [shape = 's32[1]{0}', space=sflag, size = 0x4, scoped, tag = 'scoped memory for tpu_custom_call.1']
    #allocation6 [shape = 's32[1]{0}', space=sflag, size = 0x4, scoped, tag = 'scoped memory for tpu_custom_call.1']
    #allocation7 [shape = 'u8[4096]{0}', space=vmem, size = 0x1000, scoped, tag = 'input window, operand 3, single buffered']
    #allocation8 [shape = 's32[1]{0}', space=sflag, size = 0x4, scoped, tag = 'scoped memory for tpu_custom_call.1']
    #allocation9 [shape = 'u8[16384]{0}', space=vmem, size = 0x4000, scoped, tag = 'input window, operand 4, single buffered']
    #allocation10 [shape = 'u8[4096]{0}', space=vmem, size = 0x1000, scoped, tag = 'input window, operand 5, single buffered']
    #allocation11 [shape = 's32[1]{0}', space=sflag, size = 0x4, scoped, tag = 'scoped memory for tpu_custom_call.1']
    #allocation12 [shape = 'u8[16384]{0}', space=vmem, size = 0x4000, scoped, tag = 'input window, operand 6, single buffered']
    #allocation13 [shape = 'u8[4096]{0}', space=vmem, size = 0x1000, scoped, tag = 'input window, operand 7, single buffered']
    #allocation14 [shape = 's32[1]{0}', space=sflag, size = 0x4, scoped, tag = 'scoped memory for tpu_custom_call.1']
    #allocation15 [shape = 'u8[16384]{0}', space=vmem, size = 0x4000, scoped, tag = 'input window, operand 8, single buffered']
    #allocation16 [shape = 'u8[8192]{0}', space=vmem, size = 0x2000, scoped, tag = 'input window, operand 9, single buffered']
    #allocation17 [shape = 's32[1]{0}', space=sflag, size = 0x4, scoped, tag = 'scoped memory for tpu_custom_call.1']
    #allocation18 [shape = 'u8[32768]{0}', space=vmem, size = 0x8000, scoped, tag = 'input window, operand 10, single buffered']
    #allocation19 [shape = 'u8[16384]{0}', space=vmem, size = 0x4000, scoped, tag = 'input window, operand 12, single buffered']
    #allocation20 [shape = 's32[1]{0}', space=sflag, size = 0x4, scoped, tag = 'scoped memory for tpu_custom_call.1']
    #allocation21 [shape = 'u8[8192]{0}', space=vmem, size = 0x2000, scoped, tag = 'input window, operand 13, single buffered']
    #allocation22 [shape = 'u8[32768]{0}', space=vmem, size = 0x8000, scoped, tag = 'input window, operand 14, single buffered']
    #allocation23 [shape = 's32[1]{0}', space=sflag, size = 0x4, scoped, tag = 'scoped memory for tpu_custom_call.1']
    #allocation24 [shape = 'u8[81920]{0}', space=vmem, size = 0x14000, scoped, tag = 'input window, operand 15, single buffered']
    #allocation25 [shape = 'u8[81920]{0}', space=vmem, size = 0x14000, scoped, tag = 'input window, operand 16, single buffered']
    #allocation26 [shape = 's32[1]{0}', space=sflag, size = 0x4, scoped, tag = 'scoped memory for tpu_custom_call.1']
    #allocation27 [shape = 'u8[32768]{0}', space=vmem, size = 0x8000, scoped, tag = 'output window, operand 0, single buffered']
    %22 = vsyncpa [#allocation5], 0
    %23 = vsyncpa [#allocation8], 0
    %24 = vsyncpa [#allocation11], 0
    %25 = vsyncpa [#allocation14], 0
    %26 = vsyncpa [#allocation17], 0
    %27 = vsyncpa [#allocation20], 0
    %28 = vsyncpa [#allocation23], 0
    %29 = vsyncpa [#allocation26], 0
    %30 = vsyncpa [#allocation6], 0
    // Predicated region
    $region2: #{tpu_custom_call.1} parent=1 // pred_check
      _
    $region3: #{tpu_custom_call.1} parent=1 // pred_check_branch
      %32 = sbr.rel (0) target = $region5
    $region4: #{tpu_custom_call.1} parent=1 // pred_region
      %34 = vsyncadd [#allocation5], 0
      %s35 = sshll.u32 %s0, 4
      %s36 = int_to_ptr.hbm [resolvable:$true] %s35
      %s37 = sshll.u32 [#allocation4], 4
      %s38 = int_to_ptr.vmem [resolvable:$true] %s37
      %43 = dma.hbm_to_vmem [thread:$0]  %s36, 1024, %s38, [#allocation5], 512, 512, 32
    $region5: #{tpu_custom_call.1} parent=1 // pred_fallthru
      _
    // Predicated region
    $region6: #{tpu_custom_call.1} parent=1 // pred_check
      _
    $region7: #{tpu_custom_call.1} parent=1 // pred_check_branch
      %45 = sbr.rel (0) target = $region9
    $region8: #{tpu_custom_call.1} parent=1 // pred_region
      _
    $region9: #{tpu_custom_call.1} parent=1 // pred_fallthru
      _
    // Predicated region
    $region10: #{tpu_custom_call.1} parent=1 // pred_check
      _
    $region11: #{tpu_custom_call.1} parent=1 // pred_check_branch
      %47 = sbr.rel (0) target = $region13
    $region12: #{tpu_custom_call.1} parent=1 // pred_region
      _
    $region13: #{tpu_custom_call.1} parent=1 // pred_fallthru
      _
    // Predicated region
    $region14: #{tpu_custom_call.1} parent=1 // pred_check
      _
    $region15: #{tpu_custom_call.1} parent=1 // pred_check_branch
      %49 = sbr.rel (0) target = $region17
    $region16: #{tpu_custom_call.1} parent=1 // pred_region
      %51 = vsyncadd [#allocation8], 0
      %s53 = sshll.u32 %s3, 4
      %s54 = int_to_ptr.hbm [resolvable:$true] %s53
      %s55 = sshll.u32 [#allocation7], 4
      %s56 = int_to_ptr.vmem [resolvable:$true] %s55
      %58 = dma.hbm_to_vmem [thread:$0]  %s54, 128, %s56, [#allocation8]
    $region17: #{tpu_custom_call.1} parent=1 // pred_fallthru
      _
    // Predicated region
    $region18: #{tpu_custom_call.1} parent=1 // pred_check
      _
    $region19: #{tpu_custom_call.1} parent=1 // pred_check_branch
      %60 = sbr.rel (0) target = $region21
    $region20: #{tpu_custom_call.1} parent=1 // pred_region
      %62 = vsyncadd [#allocation8], 0
      %s64 = sshll.u32 %s4, 4
      %s65 = int_to_ptr.hbm [resolvable:$true] %s64
      %s66 = sshll.u32 [#allocation9], 4
      %s67 = int_to_ptr.vmem [resolvable:$true] %s66
      %69 = dma.hbm_to_vmem [thread:$0]  %s65, 512, %s67, [#allocation8]
    $region21: #{tpu_custom_call.1} parent=1 // pred_fallthru
      _
    // Predicated region
    $region22: #{tpu_custom_call.1} parent=1 // pred_check
      _
    $region23: #{tpu_custom_call.1} parent=1 // pred_check_branch
      %71 = sbr.rel (0) target = $region25
    $region24: #{tpu_custom_call.1} parent=1 // pred_region
      %73 = vsyncadd [#allocation11], 0
      %s75 = sshll.u32 %s5, 4
      %s76 = int_to_ptr.hbm [resolvable:$true] %s75
      %s77 = sshll.u32 [#allocation10], 4
      %s78 = int_to_ptr.vmem [resolvable:$true] %s77
      %80 = dma.hbm_to_vmem [thread:$0]  %s76, 128, %s78, [#allocation11]
    $region25: #{tpu_custom_call.1} parent=1 // pred_fallthru
      _
    // Predicated region
    $region26: #{tpu_custom_call.1} parent=1 // pred_check
      _
    $region27: #{tpu_custom_call.1} parent=1 // pred_check_branch
      %82 = sbr.rel (0) target = $region29
    $region28: #{tpu_custom_call.1} parent=1 // pred_region
      %84 = vsyncadd [#allocation11], 0
      %s86 = sshll.u32 %s6, 4
      %s87 = int_to_ptr.hbm [resolvable:$true] %s86
      %s88 = sshll.u32 [#allocation12], 4
      %s89 = int_to_ptr.vmem [resolvable:$true] %s88
      %91 = dma.hbm_to_vmem [thread:$0]  %s87, 512, %s89, [#allocation11]
    $region29: #{tpu_custom_call.1} parent=1 // pred_fallthru
      _
    // Predicated region
    $region30: #{tpu_custom_call.1} parent=1 // pred_check
      _
    $region31: #{tpu_custom_call.1} parent=1 // pred_check_branch
      %93 = sbr.rel (0) target = $region33
    $region32: #{tpu_custom_call.1} parent=1 // pred_region
      %95 = vsyncadd [#allocation14], 0
      %s97 = sshll.u32 %s7, 4
      %s98 = int_to_ptr.hbm [resolvable:$true] %s97
      %s99 = sshll.u32 [#allocation13], 4
      %s100 = int_to_ptr.vmem [resolvable:$true] %s99
      %102 = dma.hbm_to_vmem [thread:$0]  %s98, 128, %s100, [#allocation14]
    $region33: #{tpu_custom_call.1} parent=1 // pred_fallthru
      _
    // Predicated region
    $region34: #{tpu_custom_call.1} parent=1 // pred_check
      _
    $region35: #{tpu_custom_call.1} parent=1 // pred_check_branch
      %104 = sbr.rel (0) target = $region37
    $region36: #{tpu_custom_call.1} parent=1 // pred_region
      %106 = vsyncadd [#allocation14], 0
      %s108 = sshll.u32 %s8, 4
      %s109 = int_to_ptr.hbm [resolvable:$true] %s108
      %s110 = sshll.u32 [#allocation15], 4
      %s111 = int_to_ptr.vmem [resolvable:$true] %s110
      %113 = dma.hbm_to_vmem [thread:$0]  %s109, 512, %s111, [#allocation14]
    $region37: #{tpu_custom_call.1} parent=1 // pred_fallthru
      _
    // Predicated region
    $region38: #{tpu_custom_call.1} parent=1 // pred_check
      _
    $region39: #{tpu_custom_call.1} parent=1 // pred_check_branch
      %115 = sbr.rel (0) target = $region41
    $region40: #{tpu_custom_call.1} parent=1 // pred_region
      %117 = vsyncadd [#allocation17], 0
      %s118 = sshll.u32 %s9, 4
      %s119 = int_to_ptr.hbm [resolvable:$true] %s118
      %s120 = sshll.u32 [#allocation16], 4
      %s121 = int_to_ptr.vmem [resolvable:$true] %s120
      %126 = dma.hbm_to_vmem [thread:$0]  %s119, 256, %s121, [#allocation17], 128, 128, 8
    $region41: #{tpu_custom_call.1} parent=1 // pred_fallthru
      _
    // Predicated region
    $region42: #{tpu_custom_call.1} parent=1 // pred_check
      _
    $region43: #{tpu_custom_call.1} parent=1 // pred_check_branch
      %128 = sbr.rel (0) target = $region45
    $region44: #{tpu_custom_call.1} parent=1 // pred_region
      %130 = vsyncadd [#allocation17], 0
      %s131 = sshll.u32 %s10, 4
      %s132 = int_to_ptr.hbm [resolvable:$true] %s131
      %s133 = sshll.u32 [#allocation18], 4
      %s134 = int_to_ptr.vmem [resolvable:$true] %s133
      %139 = dma.hbm_to_vmem [thread:$0]  %s132, 1024, %s134, [#allocation17], 512, 512, 32
    $region45: #{tpu_custom_call.1} parent=1 // pred_fallthru
      _
    // Predicated region
    $region46: #{tpu_custom_call.1} parent=1 // pred_check
      _
    $region47: #{tpu_custom_call.1} parent=1 // pred_check_branch
      %141 = sbr.rel (0) target = $region49
    $region48: #{tpu_custom_call.1} parent=1 // pred_region
      _
    $region49: #{tpu_custom_call.1} parent=1 // pred_fallthru
      _
    // Predicated region
    $region50: #{tpu_custom_call.1} parent=1 // pred_check
      _
    $region51: #{tpu_custom_call.1} parent=1 // pred_check_branch
      %143 = sbr.rel (0) target = $region53
    $region52: #{tpu_custom_call.1} parent=1 // pred_region
      %145 = vsyncadd [#allocation20], 0
      %s147 = sshll.u32 %s12, 4
      %s148 = int_to_ptr.hbm [resolvable:$true] %s147
      %s149 = sshll.u32 [#allocation19], 4
      %s150 = int_to_ptr.vmem [resolvable:$true] %s149
      %152 = dma.hbm_to_vmem [thread:$0]  %s148, 512, %s150, [#allocation20]
    $region53: #{tpu_custom_call.1} parent=1 // pred_fallthru
      _
    // Predicated region
    $region54: #{tpu_custom_call.1} parent=1 // pred_check
      _
    $region55: #{tpu_custom_call.1} parent=1 // pred_check_branch
      %154 = sbr.rel (0) target = $region57
    $region56: #{tpu_custom_call.1} parent=1 // pred_region
      %156 = vsyncadd [#allocation20], 0
      %s157 = sshll.u32 %s13, 4
      %s158 = int_to_ptr.hbm [resolvable:$true] %s157
      %s159 = sshll.u32 [#allocation21], 4
      %s160 = int_to_ptr.vmem [resolvable:$true] %s159
      %165 = dma.hbm_to_vmem [thread:$0]  %s158, 256, %s160, [#allocation20], 128, 128, 8
    $region57: #{tpu_custom_call.1} parent=1 // pred_fallthru
      _
    // Predicated region
    $region58: #{tpu_custom_call.1} parent=1 // pred_check
      _
    $region59: #{tpu_custom_call.1} parent=1 // pred_check_branch
      %167 = sbr.rel (0) target = $region61
    $region60: #{tpu_custom_call.1} parent=1 // pred_region
      %169 = vsyncadd [#allocation23], 0
      %s170 = sshll.u32 %s14, 4
      %s171 = int_to_ptr.hbm [resolvable:$true] %s170
      %s172 = sshll.u32 [#allocation22], 4
      %s173 = int_to_ptr.vmem [resolvable:$true] %s172
      %178 = dma.hbm_to_vmem [thread:$0]  %s171, 1024, %s173, [#allocation23], 512, 512, 32
    $region61: #{tpu_custom_call.1} parent=1 // pred_fallthru
      _
    // Predicated region
    $region62: #{tpu_custom_call.1} parent=1 // pred_check
      _
    $region63: #{tpu_custom_call.1} parent=1 // pred_check_branch
      %180 = sbr.rel (0) target = $region65
    $region64: #{tpu_custom_call.1} parent=1 // pred_region
      %182 = vsyncadd [#allocation23], 0
      %s183 = sshll.u32 %s15, 4
      %s184 = int_to_ptr.hbm [resolvable:$true] %s183
      %s185 = sshll.u32 [#allocation24], 4
      %s186 = int_to_ptr.vmem [resolvable:$true] %s185
      %191 = dma.hbm_to_vmem [thread:$0]  %s184, 2560, %s186, [#allocation23], 512, 512, 32
    $region65: #{tpu_custom_call.1} parent=1 // pred_fallthru
      _
    // Predicated region
    $region66: #{tpu_custom_call.1} parent=1 // pred_check
      _
    $region67: #{tpu_custom_call.1} parent=1 // pred_check_branch
      %193 = sbr.rel (0) target = $region69
    $region68: #{tpu_custom_call.1} parent=1 // pred_region
      %195 = vsyncadd [#allocation26], 0
      %s196 = sshll.u32 %s16, 4
      %s197 = int_to_ptr.hbm [resolvable:$true] %s196
      %s198 = sshll.u32 [#allocation25], 4
      %s199 = int_to_ptr.vmem [resolvable:$true] %s198
      %204 = dma.hbm_to_vmem [thread:$0]  %s197, 2560, %s199, [#allocation26], 512, 512, 32
    $region69: #{tpu_custom_call.1} parent=1 // pred_fallthru
      _
    // Predicated region
    $region70: #{tpu_custom_call.1} parent=1 // pred_check
      _
    $region71: #{tpu_custom_call.1} parent=1 // pred_check_branch
      %206 = sbr.rel (0) target = $region73
    $region72: #{tpu_custom_call.1} parent=1 // pred_region
      %208 = dma.done [#allocation5], 1024
    $region73: #{tpu_custom_call.1} parent=1 // pred_fallthru
      _
    // Predicated region
    $region74: #{tpu_custom_call.1} parent=1 // pred_check
      _
    $region75: #{tpu_custom_call.1} parent=1 // pred_check_branch
      %210 = sbr.rel (0) target = $region77
    $region76: #{tpu_custom_call.1} parent=1 // pred_region
      %212 = dma.done [#allocation8], 128
    $region77: #{tpu_custom_call.1} parent=1 // pred_fallthru
      _
    // Predicated region
    $region78: #{tpu_custom_call.1} parent=1 // pred_check
      _
    $region79: #{tpu_custom_call.1} parent=1 // pred_check_branch
      %214 = sbr.rel (0) target = $region81
    $region80: #{tpu_custom_call.1} parent=1 // pred_region
      %216 = dma.done [#allocation8], 512
    $region81: #{tpu_custom_call.1} parent=1 // pred_fallthru
      _
    // Predicated region
    $region82: #{tpu_custom_call.1} parent=1 // pred_check
      _
    $region83: #{tpu_custom_call.1} parent=1 // pred_check_branch
      %218 = sbr.rel (0) target = $region85
    $region84: #{tpu_custom_call.1} parent=1 // pred_region
      %220 = dma.done [#allocation11], 128
    $region85: #{tpu_custom_call.1} parent=1 // pred_fallthru
      _
    // Predicated region
    $region86: #{tpu_custom_call.1} parent=1 // pred_check
      _
    $region87: #{tpu_custom_call.1} parent=1 // pred_check_branch
      %222 = sbr.rel (0) target = $region89
    $region88: #{tpu_custom_call.1} parent=1 // pred_region
      %224 = dma.done [#allocation11], 512
    $region89: #{tpu_custom_call.1} parent=1 // pred_fallthru
      _
    // Predicated region
    $region90: #{tpu_custom_call.1} parent=1 // pred_check
      _
    $region91: #{tpu_custom_call.1} parent=1 // pred_check_branch
      %226 = sbr.rel (0) target = $region93
    $region92: #{tpu_custom_call.1} parent=1 // pred_region
      %228 = dma.done [#allocation14], 128
    $region93: #{tpu_custom_call.1} parent=1 // pred_fallthru
      _
    // Predicated region
    $region94: #{tpu_custom_call.1} parent=1 // pred_check
      _
    $region95: #{tpu_custom_call.1} parent=1 // pred_check_branch
      %230 = sbr.rel (0) target = $region97
    $region96: #{tpu_custom_call.1} parent=1 // pred_region
      %232 = dma.done [#allocation14], 512
    $region97: #{tpu_custom_call.1} parent=1 // pred_fallthru
      _
    // Predicated region
    $region98: #{tpu_custom_call.1} parent=1 // pred_check
      _
    $region99: #{tpu_custom_call.1} parent=1 // pred_check_branch
      %234 = sbr.rel (0) target = $region101
    $region100: #{tpu_custom_call.1} parent=1 // pred_region
      %236 = dma.done [#allocation17], 256
    $region101: #{tpu_custom_call.1} parent=1 // pred_fallthru
      _
    // Predicated region
    $region102: #{tpu_custom_call.1} parent=1 // pred_check
      _
    $region103: #{tpu_custom_call.1} parent=1 // pred_check_branch
      %238 = sbr.rel (0) target = $region105
    $region104: #{tpu_custom_call.1} parent=1 // pred_region
      %240 = dma.done [#allocation17], 1024
    $region105: #{tpu_custom_call.1} parent=1 // pred_fallthru
      _
    // Predicated region
    $region106: #{tpu_custom_call.1} parent=1 // pred_check
      _
    $region107: #{tpu_custom_call.1} parent=1 // pred_check_branch
      %242 = sbr.rel (0) target = $region109
    $region108: #{tpu_custom_call.1} parent=1 // pred_region
      %244 = dma.done [#allocation20], 512
    $region109: #{tpu_custom_call.1} parent=1 // pred_fallthru
      _
    // Predicated region
    $region110: #{tpu_custom_call.1} parent=1 // pred_check
      _
    $region111: #{tpu_custom_call.1} parent=1 // pred_check_branch
      %246 = sbr.rel (0) target = $region113
    $region112: #{tpu_custom_call.1} parent=1 // pred_region
      %248 = dma.done [#allocation20], 256
    $region113: #{tpu_custom_call.1} parent=1 // pred_fallthru
      _
    // Predicated region
    $region114: #{tpu_custom_call.1} parent=1 // pred_check
      _
    $region115: #{tpu_custom_call.1} parent=1 // pred_check_branch
      %250 = sbr.rel (0) target = $region117
    $region116: #{tpu_custom_call.1} parent=1 // pred_region
      %252 = dma.done [#allocation23], 1024
    $region117: #{tpu_custom_call.1} parent=1 // pred_fallthru
      _
    // Predicated region
    $region118: #{tpu_custom_call.1} parent=1 // pred_check
      _
    $region119: #{tpu_custom_call.1} parent=1 // pred_check_branch
      %254 = sbr.rel (0) target = $region121
    $region120: #{tpu_custom_call.1} parent=1 // pred_region
      %256 = dma.done [#allocation23], 2560
    $region121: #{tpu_custom_call.1} parent=1 // pred_fallthru
      _
    // Predicated region
    $region122: #{tpu_custom_call.1} parent=1 // pred_check
      _
    $region123: #{tpu_custom_call.1} parent=1 // pred_check_branch
      %258 = sbr.rel (0) target = $region125
    $region124: #{tpu_custom_call.1} parent=1 // pred_region
      %260 = dma.done [#allocation26], 2560
    $region125: #{tpu_custom_call.1} parent=1 // pred_fallthru
      _
    %v261 = vld [vmem:[#allocation4] sm:$0xff]
    %v262 = vld [vmem:[#allocation4 + $0x8] sm:$0xff]
    %v263 = vld [vmem:[#allocation4 + $0x10] sm:$0xff]
    %v264 = vld [vmem:[#allocation4 + $0x18] sm:$0xff]
    %v265 = vld [vmem:[#allocation4 + $0x20] sm:$0xff]
    %v266 = vld [vmem:[#allocation4 + $0x28] sm:$0xff]
    %v267 = vld [vmem:[#allocation4 + $0x30] sm:$0xff]
    %v268 = vld [vmem:[#allocation4 + $0x38] sm:$0xff]
    %v269 = vld [vmem:[%s1] sm:$0xff]
    %v270 = vld [vmem:[%s1 + $0x8] sm:$0xff]
    %v271 = vld [vmem:[%s1 + $0x10] sm:$0xff]
    %v272 = vld [vmem:[%s1 + $0x18] sm:$0xff]
    %v273 = vld [vmem:[%s1 + $0x20] sm:$0xff]
    %v274 = vld [vmem:[%s1 + $0x28] sm:$0xff]
    %v275 = vld [vmem:[%s1 + $0x30] sm:$0xff]
    %v276 = vld [vmem:[%s1 + $0x38] sm:$0xff]
    %v277 = vmul.f32 %v261, %v269
    %v278 = vmul.f32 %v262, %v270
    %v279 = vmul.f32 %v263, %v271
    %v280 = vmul.f32 %v264, %v272
    %v281 = vmul.f32 %v265, %v273
    %v282 = vmul.f32 %v266, %v274
    %v283 = vmul.f32 %v267, %v275
    %v284 = vmul.f32 %v268, %v276
    %v285 = vld [vmem:[%s2] sm:$0xff]
    %v286 = vld [vmem:[%s2 + $0x8] sm:$0xff]
    %v287 = vld [vmem:[%s2 + $0x10] sm:$0xff]
    %v288 = vld [vmem:[%s2 + $0x18] sm:$0xff]
    %v289 = vld [vmem:[%s2 + $0x20] sm:$0xff]
    %v290 = vld [vmem:[%s2 + $0x28] sm:$0xff]
    %v291 = vld [vmem:[%s2 + $0x30] sm:$0xff]
    %v292 = vld [vmem:[%s2 + $0x38] sm:$0xff]
    %v293 = vadd.f32 %v277, %v285
    %v294 = vadd.f32 %v278, %v286
    %v295 = vadd.f32 %v279, %v287
    %v296 = vadd.f32 %v280, %v288
    %v297 = vadd.f32 %v281, %v289
    %v298 = vadd.f32 %v282, %v290
    %v299 = vadd.f32 %v283, %v291
    %v300 = vadd.f32 %v284, %v292
    %v301 = vsub.f32 0.0, %v293
    %v302 = vsub.f32 0.0, %v294
    %v303 = vsub.f32 0.0, %v295
    %v304 = vsub.f32 0.0, %v296
    %v305 = vsub.f32 0.0, %v297
    %v306 = vsub.f32 0.0, %v298
    %v307 = vsub.f32 0.0, %v299
    %v308 = vsub.f32 0.0, %v300
    %v309 = vmul.f32 %v301, 1.442695
    %v310 = vpow.pop %v309
    %v311 = vmul.f32 %v302, 1.442695
    %v312 = vpow.pop %v311
    %v313 = vmul.f32 %v303, 1.442695
    %v314 = vpow.pop %v313
    %v315 = vmul.f32 %v304, 1.442695
    %v316 = vpow.pop %v315
    %v317 = vmul.f32 %v305, 1.442695
    %v318 = vpow.pop %v317
    %v319 = vmul.f32 %v306, 1.442695
    %v320 = vpow.pop %v319
    %v321 = vmul.f32 %v307, 1.442695
    %v322 = vpow.pop %v321
    %v323 = vmul.f32 %v308, 1.442695
    %v324 = vpow.pop %v323
    %v325 = vadd.f32 %v310, 1.0
    %v326 = vadd.f32 %v312, 1.0
    %v327 = vadd.f32 %v314, 1.0
    %v328 = vadd.f32 %v316, 1.0
    %v329 = vadd.f32 %v318, 1.0
    %v330 = vadd.f32 %v320, 1.0
    %v331 = vadd.f32 %v322, 1.0
    %v332 = vadd.f32 %v324, 1.0
    %v333 = vrcp.pop %v325
    %v334 = vrcp.pop %v326
    %v335 = vrcp.pop %v327
    %v336 = vrcp.pop %v328
    %v337 = vrcp.pop %v329
    %v338 = vrcp.pop %v330
    %v339 = vrcp.pop %v331
    %v340 = vrcp.pop %v332
    %v341 = vmul.f32 %v293, %v333
    %v342 = vmul.f32 %v294, %v334
    %v343 = vmul.f32 %v295, %v335
    %v344 = vmul.f32 %v296, %v336
    %v345 = vmul.f32 %v297, %v337
    %v346 = vmul.f32 %v298, %v338
    %v347 = vmul.f32 %v299, %v339
    %v348 = vmul.f32 %v300, %v340
    %v349 = vld [vmem:[#allocation7] sm:$0xff]
    %v350 = vld [vmem:[#allocation9] sm:$0xff]
    %v351 = vld [vmem:[#allocation9 + $0x8] sm:$0xff]
    %v352 = vld [vmem:[#allocation9 + $0x10] sm:$0xff]
    %v353 = vld [vmem:[#allocation9 + $0x18] sm:$0xff]
    %vm354 = vcmask 130048
    %v356 = vsel %vm354, %v349, 0
    %358 = vmatpush.msra.mxu0 0.0
    %359 = vmatpush.msra.mxu0 0.0
    %360 = vmatpush.msra.mxu0 0.0
    %361 = vmatpush.msra.mxu0 0.0
    %362 = vmatpush.msra.mxu0 0.0
    %363 = vmatpush.msra.mxu0 0.0
    %364 = vmatpush.msra.mxu0 0.0
    %365 = vmatpush.msra.mxu0 0.0
    %366 = vmatpush.msra.mxu0 0.0
    %367 = vmatpush.msra.mxu0 0.0
    %368 = vmatpush.msra.mxu0 0.0
    %369 = vmatpush.msra.mxu0 0.0
    %370 = vmatpush.msra.mxu0 0.0
    %371 = vmatpush.msra.mxu0 0.0
    %372 = vmatpush.msra.mxu0 %v345
    %373 = vmatpush.msra.mxu0 %v341
    %374 = vmatmul.f32.gmra.mxu0 %v356
    %v375 = vpop.f32.mrf.mxu0
    %v376 = vadd.f32 %v350, %v375
    %377 = vdwg.mxu0
    %378 = vmatpush.msra.mxu0 0.0
    %379 = vmatpush.msra.mxu0 0.0
    %380 = vmatpush.msra.mxu0 0.0
    %381 = vmatpush.msra.mxu0 0.0
    %382 = vmatpush.msra.mxu0 0.0
    %383 = vmatpush.msra.mxu0 0.0
    %384 = vmatpush.msra.mxu0 0.0
    %385 = vmatpush.msra.mxu0 0.0
    %386 = vmatpush.msra.mxu0 0.0
    %387 = vmatpush.msra.mxu0 0.0
    %388 = vmatpush.msra.mxu0 0.0
    %389 = vmatpush.msra.mxu0 0.0
    %390 = vmatpush.msra.mxu0 0.0
    %391 = vmatpush.msra.mxu0 0.0
    %392 = vmatpush.msra.mxu0 %v346
    %393 = vmatpush.msra.mxu0 %v342
    %394 = vmatmul.f32.gmra.mxu0 %v356
    %v395 = vpop.f32.mrf.mxu0
    %v396 = vadd.f32 %v351, %v395
    %397 = vdwg.mxu0
    %398 = vmatpush.msra.mxu0 0.0
    %399 = vmatpush.msra.mxu0 0.0
    %400 = vmatpush.msra.mxu0 0.0
    %401 = vmatpush.msra.mxu0 0.0
    %402 = vmatpush.msra.mxu0 0.0
    %403 = vmatpush.msra.mxu0 0.0
    %404 = vmatpush.msra.mxu0 0.0
    %405 = vmatpush.msra.mxu0 0.0
    %406 = vmatpush.msra.mxu0 0.0
    %407 = vmatpush.msra.mxu0 0.0
    %408 = vmatpush.msra.mxu0 0.0
    %409 = vmatpush.msra.mxu0 0.0
    %410 = vmatpush.msra.mxu0 0.0
    %411 = vmatpush.msra.mxu0 0.0
    %412 = vmatpush.msra.mxu0 %v347
    %413 = vmatpush.msra.mxu0 %v343
    %414 = vmatmul.f32.gmra.mxu0 %v356
    %v415 = vpop.f32.mrf.mxu0
    %v416 = vadd.f32 %v352, %v415
    %417 = vdwg.mxu0
    %418 = vmatpush.msra.mxu0 0.0
    %419 = vmatpush.msra.mxu0 0.0
    %420 = vmatpush.msra.mxu0 0.0
    %421 = vmatpush.msra.mxu0 0.0
    %422 = vmatpush.msra.mxu0 0.0
    %423 = vmatpush.msra.mxu0 0.0
    %424 = vmatpush.msra.mxu0 0.0
    %425 = vmatpush.msra.mxu0 0.0
    %426 = vmatpush.msra.mxu0 0.0
    %427 = vmatpush.msra.mxu0 0.0
    %428 = vmatpush.msra.mxu0 0.0
    %429 = vmatpush.msra.mxu0 0.0
    %430 = vmatpush.msra.mxu0 0.0
    %431 = vmatpush.msra.mxu0 0.0
    %432 = vmatpush.msra.mxu0 %v348
    %433 = vmatpush.msra.mxu0 %v344
    %434 = vmatmul.f32.gmra.mxu0 %v356
    %v435 = vpop.f32.mrf.mxu0
    %v436 = vadd.f32 %v353, %v435
    %437 = vdwg.mxu0
    %v438 = vsub.f32 0.0, %v376
    %v439 = vsub.f32 0.0, %v396
    %v440 = vsub.f32 0.0, %v416
    %v441 = vsub.f32 0.0, %v436
    %v442 = vmul.f32 %v438, 1.442695
    %v443 = vpow.pop %v442
    %v444 = vmul.f32 %v439, 1.442695
    %v445 = vpow.pop %v444
    %v446 = vmul.f32 %v440, 1.442695
    %v447 = vpow.pop %v446
    %v448 = vmul.f32 %v441, 1.442695
    %v449 = vpow.pop %v448
    %v450 = vadd.f32 %v443, 1.0
    %v451 = vadd.f32 %v445, 1.0
    %v452 = vadd.f32 %v447, 1.0
    %v453 = vadd.f32 %v449, 1.0
    %v454 = vrcp.pop %v450
    %v455 = vrcp.pop %v451
    %v456 = vrcp.pop %v452
    %v457 = vrcp.pop %v453
    %v458 = vmul.f32 %v376, %v454
    %v459 = vmul.f32 %v396, %v455
    %v460 = vmul.f32 %v416, %v456
    %v461 = vmul.f32 %v436, %v457
    %462 = vst [vmem:[#allocation3] sm:$0xff] %v458
    %463 = vst [vmem:[#allocation3 + $0x8] sm:$0xff] %v459
    %464 = vst [vmem:[#allocation3 + $0x10] sm:$0xff] %v460
    %465 = vst [vmem:[#allocation3 + $0x18] sm:$0xff] %v461
    %v466 = vld [vmem:[#allocation24] sm:$0xff]
    %v467 = vld [vmem:[#allocation24 + $0x8] sm:$0xff]
    %v468 = vld [vmem:[#allocation24 + $0x10] sm:$0xff]
    %v469 = vld [vmem:[#allocation24 + $0x18] sm:$0xff]
    %470 = vrot.lane.b32.xlu0 %v458, 32
    %v471 = vpop.permute.xlu0 %470
    %472 = vrot.lane.b32.xlu0 %v459, 32
    %v473 = vpop.permute.xlu0 %472
    %474 = vrot.lane.b32.xlu0 %v460, 32
    %v475 = vpop.permute.xlu0 %474
    %476 = vrot.lane.b32.xlu0 %v461, 32
    %v477 = vpop.permute.xlu0 %476
    %v478 = vlaneseq
    %v479 = vand.u32 %v478, 127
    %vm480 = vcmp.lt.s32.totalorder %v479, 32
    %v481 = vsel %vm480, %v475, %v477
    %v482 = vsel %vm480, %v473, %v475
    %v483 = vsel %vm480, %v471, %v473
    %v484 = vsel %vm480, %v477, %v471
    %v485 = vmul.f32 %v484, %v466
    %v486 = vmul.f32 %v483, %v467
    %v487 = vmul.f32 %v482, %v468
    %v488 = vmul.f32 %v481, %v469
    %489 = vst [vmem:[#allocation2] sm:$0xff] %v485
    %490 = vst [vmem:[#allocation2 + $0x8] sm:$0xff] %v486
    %491 = vst [vmem:[#allocation2 + $0x10] sm:$0xff] %v487
    %492 = vst [vmem:[#allocation2 + $0x18] sm:$0xff] %v488
    %s493 = scalar_lea.vmem [#allocation24], 32
    %v494 = vld [vmem:[%s493] sm:$0xff]
    %v495 = vld [vmem:[%s493 + $0x8] sm:$0xff]
    %v496 = vld [vmem:[%s493 + $0x10] sm:$0xff]
    %v497 = vld [vmem:[%s493 + $0x18] sm:$0xff]
    %498 = vrot.lane.b32.xlu0 %v458, 16
    %v499 = vpop.permute.xlu0 %498
    %500 = vrot.lane.b32.xlu0 %v459, 16
    %v501 = vpop.permute.xlu0 %500
    %502 = vrot.lane.b32.xlu0 %v460, 16
    %v503 = vpop.permute.xlu0 %502
    %504 = vrot.lane.b32.xlu0 %v461, 16
    %v505 = vpop.permute.xlu0 %504
    %vm506 = vcmp.lt.s32.totalorder %v479, 16
    %v507 = vsel %vm506, %v503, %v505
    %v508 = vsel %vm506, %v501, %v503
    %v509 = vsel %vm506, %v499, %v501
    %v510 = vsel %vm506, %v505, %v499
    %v511 = vmul.f32 %v510, %v494
    %v512 = vmul.f32 %v509, %v495
    %v513 = vmul.f32 %v508, %v496
    %v514 = vmul.f32 %v507, %v497
    %515 = vst [vmem:[#allocation2 + $0x20] sm:$0xff] %v511
    %516 = vst [vmem:[#allocation2 + $0x28] sm:$0xff] %v512
    %517 = vst [vmem:[#allocation2 + $0x30] sm:$0xff] %v513
    %518 = vst [vmem:[#allocation2 + $0x38] sm:$0xff] %v514
    %519 = vst [vmem:[#allocation2 + $0x40] sm:$0xff] %v458
    %520 = vst [vmem:[#allocation2 + $0x48] sm:$0xff] %v459
    %521 = vst [vmem:[#allocation2 + $0x50] sm:$0xff] %v460
    %522 = vst [vmem:[#allocation2 + $0x58] sm:$0xff] %v461
    %s523 = scalar_lea.vmem [#allocation24], 96
    %v524 = vld [vmem:[%s523] sm:$0xff]
    %v525 = vld [vmem:[%s523 + $0x8] sm:$0xff]
    %v526 = vld [vmem:[%s523 + $0x10] sm:$0xff]
    %v527 = vld [vmem:[%s523 + $0x18] sm:$0xff]
    %528 = vrot.lane.b32.xlu0 %v458, 112
    %v529 = vpop.permute.xlu0 %528
    %530 = vrot.lane.b32.xlu0 %v459, 112
    %v531 = vpop.permute.xlu0 %530
    %532 = vrot.lane.b32.xlu0 %v460, 112
    %v533 = vpop.permute.xlu0 %532
    %534 = vrot.lane.b32.xlu0 %v461, 112
    %v535 = vpop.permute.xlu0 %534
    %vm536 = vcmp.lt.s32.totalorder %v479, 112
    %v537 = vsel %vm536, %v533, %v535
    %v538 = vsel %vm536, %v531, %v533
    %v539 = vsel %vm536, %v529, %v531
    %v540 = vsel %vm536, %v535, %v529
    %v541 = vmul.f32 %v539, %v524
    %v542 = vmul.f32 %v538, %v525
    %v543 = vmul.f32 %v537, %v526
    %v544 = vmul.f32 %v540, %v527
    %545 = vst [vmem:[#allocation2 + $0x60] sm:$0xff] %v541
    %546 = vst [vmem:[#allocation2 + $0x68] sm:$0xff] %v542
    %547 = vst [vmem:[#allocation2 + $0x70] sm:$0xff] %v543
    %548 = vst [vmem:[#allocation2 + $0x78] sm:$0xff] %v544
    %s549 = scalar_lea.vmem [#allocation24], 128
    %v550 = vld [vmem:[%s549] sm:$0xff]
    %v551 = vld [vmem:[%s549 + $0x8] sm:$0xff]
    %v552 = vld [vmem:[%s549 + $0x10] sm:$0xff]
    %v553 = vld [vmem:[%s549 + $0x18] sm:$0xff]
    %554 = vrot.lane.b32.xlu0 %v458, 96
    %v555 = vpop.permute.xlu0 %554
    %556 = vrot.lane.b32.xlu0 %v459, 96
    %v557 = vpop.permute.xlu0 %556
    %558 = vrot.lane.b32.xlu0 %v460, 96
    %v559 = vpop.permute.xlu0 %558
    %560 = vrot.lane.b32.xlu0 %v461, 96
    %v561 = vpop.permute.xlu0 %560
    %vm562 = vcmp.lt.s32.totalorder %v479, 96
    %v563 = vsel %vm562, %v559, %v561
    %v564 = vsel %vm562, %v557, %v559
    %v565 = vsel %vm562, %v555, %v557
    %v566 = vsel %vm562, %v561, %v555
    %v567 = vmul.f32 %v565, %v550
    %v568 = vmul.f32 %v564, %v551
    %v569 = vmul.f32 %v563, %v552
    %v570 = vmul.f32 %v566, %v553
    %571 = vst [vmem:[#allocation2 + $0x80] sm:$0xff] %v567
    %572 = vst [vmem:[#allocation2 + $0x88] sm:$0xff] %v568
    %573 = vst [vmem:[#allocation2 + $0x90] sm:$0xff] %v569
    %574 = vst [vmem:[#allocation2 + $0x98] sm:$0xff] %v570
    %v575 = vld [vmem:[#allocation10] sm:$0xff]
    %v576 = vld [vmem:[#allocation2] sm:$0xff]
    %v577 = vld [vmem:[#allocation2 + $0x8] sm:$0xff]
    %v578 = vld [vmem:[#allocation2 + $0x10] sm:$0xff]
    %v579 = vld [vmem:[#allocation2 + $0x18] sm:$0xff]
    %v580 = vld [vmem:[#allocation2 + $0x20] sm:$0xff]
    %v581 = vld [vmem:[#allocation2 + $0x28] sm:$0xff]
    %v582 = vld [vmem:[#allocation2 + $0x30] sm:$0xff]
    %v583 = vld [vmem:[#allocation2 + $0x38] sm:$0xff]
    %v584 = vld [vmem:[#allocation2 + $0x40] sm:$0xff]
    %v585 = vld [vmem:[#allocation2 + $0x48] sm:$0xff]
    %v586 = vld [vmem:[#allocation2 + $0x50] sm:$0xff]
    %v587 = vld [vmem:[#allocation2 + $0x58] sm:$0xff]
    %v588 = vld [vmem:[#allocation2 + $0x60] sm:$0xff]
    %v589 = vld [vmem:[#allocation2 + $0x68] sm:$0xff]
    %v590 = vld [vmem:[#allocation2 + $0x70] sm:$0xff]
    %v591 = vld [vmem:[#allocation2 + $0x78] sm:$0xff]
    %v592 = vld [vmem:[#allocation2 + $0x80] sm:$0xff]
    %v593 = vld [vmem:[#allocation2 + $0x88] sm:$0xff]
    %v594 = vld [vmem:[#allocation2 + $0x90] sm:$0xff]
    %v595 = vld [vmem:[#allocation2 + $0x98] sm:$0xff]
    %v596 = vld [vmem:[#allocation12] sm:$0xff]
    %v597 = vld [vmem:[#allocation12 + $0x8] sm:$0xff]
    %v598 = vld [vmem:[#allocation12 + $0x10] sm:$0xff]
    %v599 = vld [vmem:[#allocation12 + $0x18] sm:$0xff]
    %vm600 = vcmask 326656
    %v602 = vsel %vm600, %v575, 0
    %604 = vmatpush.msra.mxu0 0.0
    %605 = vmatpush.msra.mxu0 0.0
    %606 = vmatpush.msra.mxu0 0.0
    %607 = vmatpush.msra.mxu0 0.0
    %608 = vmatpush.msra.mxu0 0.0
    %609 = vmatpush.msra.mxu0 0.0
    %610 = vmatpush.msra.mxu0 0.0
    %611 = vmatpush.msra.mxu0 0.0
    %612 = vmatpush.msra.mxu0 0.0
    %613 = vmatpush.msra.mxu0 0.0
    %614 = vmatpush.msra.mxu0 0.0
    %615 = vmatpush.msra.mxu0 %v592
    %616 = vmatpush.msra.mxu0 %v588
    %617 = vmatpush.msra.mxu0 %v584
    %618 = vmatpush.msra.mxu0 %v580
    %619 = vmatpush.msra.mxu0 %v576
    %620 = vmatmul.f32.gmra.mxu0 %v602
    %v621 = vpop.f32.mrf.mxu0
    %v622 = vadd.f32 %v596, %v621
    %623 = vdwg.mxu0
    %624 = vmatpush.msra.mxu0 0.0
    %625 = vmatpush.msra.mxu0 0.0
    %626 = vmatpush.msra.mxu0 0.0
    %627 = vmatpush.msra.mxu0 0.0
    %628 = vmatpush.msra.mxu0 0.0
    %629 = vmatpush.msra.mxu0 0.0
    %630 = vmatpush.msra.mxu0 0.0
    %631 = vmatpush.msra.mxu0 0.0
    %632 = vmatpush.msra.mxu0 0.0
    %633 = vmatpush.msra.mxu0 0.0
    %634 = vmatpush.msra.mxu0 0.0
    %635 = vmatpush.msra.mxu0 %v593
    %636 = vmatpush.msra.mxu0 %v589
    %637 = vmatpush.msra.mxu0 %v585
    %638 = vmatpush.msra.mxu0 %v581
    %639 = vmatpush.msra.mxu0 %v577
    %640 = vmatmul.f32.gmra.mxu0 %v602
    %v641 = vpop.f32.mrf.mxu0
    %v642 = vadd.f32 %v597, %v641
    %643 = vdwg.mxu0
    %644 = vmatpush.msra.mxu0 0.0
    %645 = vmatpush.msra.mxu0 0.0
    %646 = vmatpush.msra.mxu0 0.0
    %647 = vmatpush.msra.mxu0 0.0
    %648 = vmatpush.msra.mxu0 0.0
    %649 = vmatpush.msra.mxu0 0.0
    %650 = vmatpush.msra.mxu0 0.0
    %651 = vmatpush.msra.mxu0 0.0
    %652 = vmatpush.msra.mxu0 0.0
    %653 = vmatpush.msra.mxu0 0.0
    %654 = vmatpush.msra.mxu0 0.0
    %655 = vmatpush.msra.mxu0 %v594
    %656 = vmatpush.msra.mxu0 %v590
    %657 = vmatpush.msra.mxu0 %v586
    %658 = vmatpush.msra.mxu0 %v582
    %659 = vmatpush.msra.mxu0 %v578
    %660 = vmatmul.f32.gmra.mxu0 %v602
    %v661 = vpop.f32.mrf.mxu0
    %v662 = vadd.f32 %v598, %v661
    %663 = vdwg.mxu0
    %664 = vmatpush.msra.mxu0 0.0
    %665 = vmatpush.msra.mxu0 0.0
    %666 = vmatpush.msra.mxu0 0.0
    %667 = vmatpush.msra.mxu0 0.0
    %668 = vmatpush.msra.mxu0 0.0
    %669 = vmatpush.msra.mxu0 0.0
    %670 = vmatpush.msra.mxu0 0.0
    %671 = vmatpush.msra.mxu0 0.0
    %672 = vmatpush.msra.mxu0 0.0
    %673 = vmatpush.msra.mxu0 0.0
    %674 = vmatpush.msra.mxu0 0.0
    %675 = vmatpush.msra.mxu0 %v595
    %676 = vmatpush.msra.mxu0 %v591
    %677 = vmatpush.msra.mxu0 %v587
    %678 = vmatpush.msra.mxu0 %v583
    %679 = vmatpush.msra.mxu0 %v579
    %680 = vmatmul.f32.gmra.mxu0 %v602
    %v681 = vpop.f32.mrf.mxu0
    %v682 = vadd.f32 %v599, %v681
    %683 = vdwg.mxu0
    %v684 = vsub.f32 0.0, %v622
    %v685 = vsub.f32 0.0, %v642
    %v686 = vsub.f32 0.0, %v662
    %v687 = vsub.f32 0.0, %v682
    %v688 = vmul.f32 %v684, 1.442695
    %v689 = vpow.pop %v688
    %v690 = vmul.f32 %v685, 1.442695
    %v691 = vpow.pop %v690
    %v692 = vmul.f32 %v686, 1.442695
    %v693 = vpow.pop %v692
    %v694 = vmul.f32 %v687, 1.442695
    %v695 = vpow.pop %v694
    %v696 = vadd.f32 %v689, 1.0
    %v697 = vadd.f32 %v691, 1.0
    %v698 = vadd.f32 %v693, 1.0
    %v699 = vadd.f32 %v695, 1.0
    %v700 = vrcp.pop %v696
    %v701 = vrcp.pop %v697
    %v702 = vrcp.pop %v698
    %v703 = vrcp.pop %v699
    %v704 = vmul.f32 %v622, %v700
    %v705 = vmul.f32 %v642, %v701
    %v706 = vmul.f32 %v662, %v702
    %v707 = vmul.f32 %v682, %v703
    %v708 = vld [vmem:[#allocation25] sm:$0xff]
    %v709 = vld [vmem:[#allocation25 + $0x8] sm:$0xff]
    %v710 = vld [vmem:[#allocation25 + $0x10] sm:$0xff]
    %v711 = vld [vmem:[#allocation25 + $0x18] sm:$0xff]
    %712 = vrot.lane.b32.xlu0 %v704, 2
    %v713 = vpop.permute.xlu0 %712
    %714 = vrot.lane.b32.xlu0 %v705, 2
    %v715 = vpop.permute.xlu0 %714
    %716 = vrot.lane.b32.xlu0 %v706, 2
    %v717 = vpop.permute.xlu0 %716
    %718 = vrot.lane.b32.xlu0 %v707, 2
    %v719 = vpop.permute.xlu0 %718
    %vm720 = vcmp.lt.s32.totalorder %v479, 2
    %v721 = vsel %vm720, %v717, %v719
    %v722 = vsel %vm720, %v715, %v717
    %v723 = vsel %vm720, %v713, %v715
    %v724 = vsel %vm720, %v719, %v713
    %v725 = vmul.f32 %v724, %v708
    %v726 = vmul.f32 %v723, %v709
    %v727 = vmul.f32 %v722, %v710
    %v728 = vmul.f32 %v721, %v711
    %729 = vst [vmem:[#allocation2] sm:$0xff] %v725
    %730 = vst [vmem:[#allocation2 + $0x8] sm:$0xff] %v726
    %731 = vst [vmem:[#allocation2 + $0x10] sm:$0xff] %v727
    %732 = vst [vmem:[#allocation2 + $0x18] sm:$0xff] %v728
    %s733 = scalar_lea.vmem [#allocation25], 32
    %v734 = vld [vmem:[%s733] sm:$0xff]
    %v735 = vld [vmem:[%s733 + $0x8] sm:$0xff]
    %v736 = vld [vmem:[%s733 + $0x10] sm:$0xff]
    %v737 = vld [vmem:[%s733 + $0x18] sm:$0xff]
    %738 = vrot.lane.b32.xlu0 %v704, 1
    %v739 = vpop.permute.xlu0 %738
    %740 = vrot.lane.b32.xlu0 %v705, 1
    %v741 = vpop.permute.xlu0 %740
    %742 = vrot.lane.b32.xlu0 %v706, 1
    %v743 = vpop.permute.xlu0 %742
    %744 = vrot.lane.b32.xlu0 %v707, 1
    %v745 = vpop.permute.xlu0 %744
    %vm746 = vcmp.lt.s32.totalorder %v479, 1
    %v747 = vsel %vm746, %v743, %v745
    %v748 = vsel %vm746, %v741, %v743
    %v749 = vsel %vm746, %v739, %v741
    %v750 = vsel %vm746, %v745, %v739
    %v751 = vmul.f32 %v750, %v734
    %v752 = vmul.f32 %v749, %v735
    %v753 = vmul.f32 %v748, %v736
    %v754 = vmul.f32 %v747, %v737
    %755 = vst [vmem:[#allocation2 + $0x20] sm:$0xff] %v751
    %756 = vst [vmem:[#allocation2 + $0x28] sm:$0xff] %v752
    %757 = vst [vmem:[#allocation2 + $0x30] sm:$0xff] %v753
    %758 = vst [vmem:[#allocation2 + $0x38] sm:$0xff] %v754
    %759 = vst [vmem:[#allocation2 + $0x40] sm:$0xff] %v704
    %760 = vst [vmem:[#allocation2 + $0x48] sm:$0xff] %v705
    %761 = vst [vmem:[#allocation2 + $0x50] sm:$0xff] %v706
    %762 = vst [vmem:[#allocation2 + $0x58] sm:$0xff] %v707
    %s763 = scalar_lea.vmem [#allocation25], 96
    %v764 = vld [vmem:[%s763] sm:$0xff]
    %v765 = vld [vmem:[%s763 + $0x8] sm:$0xff]
    %v766 = vld [vmem:[%s763 + $0x10] sm:$0xff]
    %v767 = vld [vmem:[%s763 + $0x18] sm:$0xff]
    %768 = vrot.lane.b32.xlu0 %v704, 127
    %v769 = vpop.permute.xlu0 %768
    %770 = vrot.lane.b32.xlu0 %v705, 127
    %v771 = vpop.permute.xlu0 %770
    %772 = vrot.lane.b32.xlu0 %v706, 127
    %v773 = vpop.permute.xlu0 %772
    %774 = vrot.lane.b32.xlu0 %v707, 127
    %v775 = vpop.permute.xlu0 %774
    %vm776 = vcmp.lt.s32.totalorder %v479, 127
    %v777 = vsel %vm776, %v773, %v775
    %v778 = vsel %vm776, %v771, %v773
    %v779 = vsel %vm776, %v769, %v771
    %v780 = vsel %vm776, %v775, %v769
    %v781 = vmul.f32 %v779, %v764
    %v782 = vmul.f32 %v778, %v765
    %v783 = vmul.f32 %v777, %v766
    %v784 = vmul.f32 %v780, %v767
    %785 = vst [vmem:[#allocation2 + $0x60] sm:$0xff] %v781
    %786 = vst [vmem:[#allocation2 + $0x68] sm:$0xff] %v782
    %787 = vst [vmem:[#allocation2 + $0x70] sm:$0xff] %v783
    %788 = vst [vmem:[#allocation2 + $0x78] sm:$0xff] %v784
    %s789 = scalar_lea.vmem [#allocation25], 128
    %v790 = vld [vmem:[%s789] sm:$0xff]
    %v791 = vld [vmem:[%s789 + $0x8] sm:$0xff]
    %v792 = vld [vmem:[%s789 + $0x10] sm:$0xff]
    %v793 = vld [vmem:[%s789 + $0x18] sm:$0xff]
    %794 = vrot.lane.b32.xlu0 %v704, 126
    %v795 = vpop.permute.xlu0 %794
    %796 = vrot.lane.b32.xlu0 %v705, 126
    %v797 = vpop.permute.xlu0 %796
    %798 = vrot.lane.b32.xlu0 %v706, 126
    %v799 = vpop.permute.xlu0 %798
    %800 = vrot.lane.b32.xlu0 %v707, 126
    %v801 = vpop.permute.xlu0 %800
    %vm802 = vcmp.lt.s32.totalorder %v479, 126
    %v803 = vsel %vm802, %v799, %v801
    %v804 = vsel %vm802, %v797, %v799
    %v805 = vsel %vm802, %v795, %v797
    %v806 = vsel %vm802, %v801, %v795
    %v807 = vmul.f32 %v805, %v790
    %v808 = vmul.f32 %v804, %v791
    %v809 = vmul.f32 %v803, %v792
    %v810 = vmul.f32 %v806, %v793
    %811 = vst [vmem:[#allocation2 + $0x80] sm:$0xff] %v807
    %812 = vst [vmem:[#allocation2 + $0x88] sm:$0xff] %v808
    %813 = vst [vmem:[#allocation2 + $0x90] sm:$0xff] %v809
    %814 = vst [vmem:[#allocation2 + $0x98] sm:$0xff] %v810
    %v815 = vld [vmem:[#allocation13] sm:$0xff]
    %v816 = vld [vmem:[#allocation2] sm:$0xff]
    %v817 = vld [vmem:[#allocation2 + $0x8] sm:$0xff]
    %v818 = vld [vmem:[#allocation2 + $0x10] sm:$0xff]
    %v819 = vld [vmem:[#allocation2 + $0x18] sm:$0xff]
    %v820 = vld [vmem:[#allocation2 + $0x20] sm:$0xff]
    %v821 = vld [vmem:[#allocation2 + $0x28] sm:$0xff]
    %v822 = vld [vmem:[#allocation2 + $0x30] sm:$0xff]
    %v823 = vld [vmem:[#allocation2 + $0x38] sm:$0xff]
    %v824 = vld [vmem:[#allocation2 + $0x40] sm:$0xff]
    %v825 = vld [vmem:[#allocation2 + $0x48] sm:$0xff]
    %v826 = vld [vmem:[#allocation2 + $0x50] sm:$0xff]
    %v827 = vld [vmem:[#allocation2 + $0x58] sm:$0xff]
    %v828 = vld [vmem:[#allocation2 + $0x60] sm:$0xff]
    %v829 = vld [vmem:[#allocation2 + $0x68] sm:$0xff]
    %v830 = vld [vmem:[#allocation2 + $0x70] sm:$0xff]
    %v831 = vld [vmem:[#allocation2 + $0x78] sm:$0xff]
    %v832 = vld [vmem:[#allocation2 + $0x80] sm:$0xff]
    %v833 = vld [vmem:[#allocation2 + $0x88] sm:$0xff]
    %v834 = vld [vmem:[#allocation2 + $0x90] sm:$0xff]
    %v835 = vld [vmem:[#allocation2 + $0x98] sm:$0xff]
    %v836 = vld [vmem:[#allocation15] sm:$0xff]
    %v837 = vld [vmem:[#allocation15 + $0x8] sm:$0xff]
    %v838 = vld [vmem:[#allocation15 + $0x10] sm:$0xff]
    %v839 = vld [vmem:[#allocation15 + $0x18] sm:$0xff]
    %v841 = vsel %vm600, %v815, 0
    %843 = vmatpush.msra.mxu0 0.0
    %844 = vmatpush.msra.mxu0 0.0
    %845 = vmatpush.msra.mxu0 0.0
    %846 = vmatpush.msra.mxu0 0.0
    %847 = vmatpush.msra.mxu0 0.0
    %848 = vmatpush.msra.mxu0 0.0
    %849 = vmatpush.msra.mxu0 0.0
    %850 = vmatpush.msra.mxu0 0.0
    %851 = vmatpush.msra.mxu0 0.0
    %852 = vmatpush.msra.mxu0 0.0
    %853 = vmatpush.msra.mxu0 0.0
    %854 = vmatpush.msra.mxu0 %v832
    %855 = vmatpush.msra.mxu0 %v828
    %856 = vmatpush.msra.mxu0 %v824
    %857 = vmatpush.msra.mxu0 %v820
    %858 = vmatpush.msra.mxu0 %v816
    %859 = vmatmul.f32.gmra.mxu0 %v841
    %v860 = vpop.f32.mrf.mxu0
    %v861 = vadd.f32 %v836, %v860
    %862 = vdwg.mxu0
    %863 = vmatpush.msra.mxu0 0.0
    %864 = vmatpush.msra.mxu0 0.0
    %865 = vmatpush.msra.mxu0 0.0
    %866 = vmatpush.msra.mxu0 0.0
    %867 = vmatpush.msra.mxu0 0.0
    %868 = vmatpush.msra.mxu0 0.0
    %869 = vmatpush.msra.mxu0 0.0
    %870 = vmatpush.msra.mxu0 0.0
    %871 = vmatpush.msra.mxu0 0.0
    %872 = vmatpush.msra.mxu0 0.0
    %873 = vmatpush.msra.mxu0 0.0
    %874 = vmatpush.msra.mxu0 %v833
    %875 = vmatpush.msra.mxu0 %v829
    %876 = vmatpush.msra.mxu0 %v825
    %877 = vmatpush.msra.mxu0 %v821
    %878 = vmatpush.msra.mxu0 %v817
    %879 = vmatmul.f32.gmra.mxu0 %v841
    %v880 = vpop.f32.mrf.mxu0
    %v881 = vadd.f32 %v837, %v880
    %882 = vdwg.mxu0
    %883 = vmatpush.msra.mxu0 0.0
    %884 = vmatpush.msra.mxu0 0.0
    %885 = vmatpush.msra.mxu0 0.0
    %886 = vmatpush.msra.mxu0 0.0
    %887 = vmatpush.msra.mxu0 0.0
    %888 = vmatpush.msra.mxu0 0.0
    %889 = vmatpush.msra.mxu0 0.0
    %890 = vmatpush.msra.mxu0 0.0
    %891 = vmatpush.msra.mxu0 0.0
    %892 = vmatpush.msra.mxu0 0.0
    %893 = vmatpush.msra.mxu0 0.0
    %894 = vmatpush.msra.mxu0 %v834
    %895 = vmatpush.msra.mxu0 %v830
    %896 = vmatpush.msra.mxu0 %v826
    %897 = vmatpush.msra.mxu0 %v822
    %898 = vmatpush.msra.mxu0 %v818
    %899 = vmatmul.f32.gmra.mxu0 %v841
    %v900 = vpop.f32.mrf.mxu0
    %v901 = vadd.f32 %v838, %v900
    %902 = vdwg.mxu0
    %903 = vmatpush.msra.mxu0 0.0
    %904 = vmatpush.msra.mxu0 0.0
    %905 = vmatpush.msra.mxu0 0.0
    %906 = vmatpush.msra.mxu0 0.0
    %907 = vmatpush.msra.mxu0 0.0
    %908 = vmatpush.msra.mxu0 0.0
    %909 = vmatpush.msra.mxu0 0.0
    %910 = vmatpush.msra.mxu0 0.0
    %911 = vmatpush.msra.mxu0 0.0
    %912 = vmatpush.msra.mxu0 0.0
    %913 = vmatpush.msra.mxu0 0.0
    %914 = vmatpush.msra.mxu0 %v835
    %915 = vmatpush.msra.mxu0 %v831
    %916 = vmatpush.msra.mxu0 %v827
    %917 = vmatpush.msra.mxu0 %v823
    %918 = vmatpush.msra.mxu0 %v819
    %919 = vmatmul.f32.gmra.mxu0 %v841
    %v920 = vpop.f32.mrf.mxu0
    %v921 = vadd.f32 %v839, %v920
    %922 = vdwg.mxu0
    %v923 = vsub.f32 0.0, %v861
    %v924 = vsub.f32 0.0, %v881
    %v925 = vsub.f32 0.0, %v901
    %v926 = vsub.f32 0.0, %v921
    %v927 = vmul.f32 %v923, 1.442695
    %v928 = vpow.pop %v927
    %v929 = vmul.f32 %v924, 1.442695
    %v930 = vpow.pop %v929
    %v931 = vmul.f32 %v925, 1.442695
    %v932 = vpow.pop %v931
    %v933 = vmul.f32 %v926, 1.442695
    %v934 = vpow.pop %v933
    %v935 = vadd.f32 %v928, 1.0
    %v936 = vadd.f32 %v930, 1.0
    %v937 = vadd.f32 %v932, 1.0
    %v938 = vadd.f32 %v934, 1.0
    %v939 = vrcp.pop %v935
    %v940 = vrcp.pop %v936
    %v941 = vrcp.pop %v937
    %v942 = vrcp.pop %v938
    %v943 = vmul.f32 %v861, %v939
    %v944 = vmul.f32 %v881, %v940
    %v945 = vmul.f32 %v901, %v941
    %v946 = vmul.f32 %v921, %v942
    %947 = vst [vmem:[#allocation3 + $0x20] sm:$0xff] %v943
    %948 = vst [vmem:[#allocation3 + $0x28] sm:$0xff] %v944
    %949 = vst [vmem:[#allocation3 + $0x30] sm:$0xff] %v945
    %950 = vst [vmem:[#allocation3 + $0x38] sm:$0xff] %v946
    %v951 = vld [vmem:[#allocation16] sm:$0xff]
    %v952 = vld [vmem:[#allocation16 + $0x8] sm:$0xff]
    %v953 = vld [vmem:[#allocation3] sm:$0xff]
    %v954 = vld [vmem:[#allocation3 + $0x8] sm:$0xff]
    %v955 = vld [vmem:[#allocation3 + $0x10] sm:$0xff]
    %v956 = vld [vmem:[#allocation3 + $0x18] sm:$0xff]
    %v957 = vld [vmem:[#allocation3 + $0x20] sm:$0xff]
    %v958 = vld [vmem:[#allocation3 + $0x28] sm:$0xff]
    %v959 = vld [vmem:[#allocation3 + $0x30] sm:$0xff]
    %v960 = vld [vmem:[#allocation3 + $0x38] sm:$0xff]
    %v961 = vld [vmem:[#allocation18] sm:$0xff]
    %v962 = vld [vmem:[#allocation18 + $0x8] sm:$0xff]
    %v963 = vld [vmem:[#allocation18 + $0x10] sm:$0xff]
    %v964 = vld [vmem:[#allocation18 + $0x18] sm:$0xff]
    %v965 = vld [vmem:[#allocation18 + $0x20] sm:$0xff]
    %v966 = vld [vmem:[#allocation18 + $0x28] sm:$0xff]
    %v967 = vld [vmem:[#allocation18 + $0x30] sm:$0xff]
    %v968 = vld [vmem:[#allocation18 + $0x38] sm:$0xff]
    %v970 = vsel %vm354, %v951, 0
    %v973 = vsel %vm354, %v952, 0
    %975 = vmatpush.msra.mxu0 0.0
    %976 = vmatpush.msra.mxu0 0.0
    %977 = vmatpush.msra.mxu0 0.0
    %978 = vmatpush.msra.mxu0 0.0
    %979 = vmatpush.msra.mxu0 0.0
    %980 = vmatpush.msra.mxu0 0.0
    %981 = vmatpush.msra.mxu0 0.0
    %982 = vmatpush.msra.mxu0 0.0
    %983 = vmatpush.msra.mxu0 0.0
    %984 = vmatpush.msra.mxu0 0.0
    %985 = vmatpush.msra.mxu0 0.0
    %986 = vmatpush.msra.mxu0 0.0
    %987 = vmatpush.msra.mxu0 0.0
    %988 = vmatpush.msra.mxu0 0.0
    %989 = vmatpush.msra.mxu0 %v957
    %990 = vmatpush.msra.mxu0 %v953
    %991 = vmatmul.f32.gmra.mxu0 %v970
    %v992 = vpop.f32.mrf.mxu0
    %v993 = vadd.f32 %v961, %v992
    %994 = vmatmul.f32.gmra.mxu0 %v973
    %v995 = vpop.f32.mrf.mxu0
    %v996 = vadd.f32 %v965, %v995
    %997 = vdwg.mxu0
    %998 = vmatpush.msra.mxu0 0.0
    %999 = vmatpush.msra.mxu0 0.0
    %1000 = vmatpush.msra.mxu0 0.0
    %1001 = vmatpush.msra.mxu0 0.0
    %1002 = vmatpush.msra.mxu0 0.0
    %1003 = vmatpush.msra.mxu0 0.0
    %1004 = vmatpush.msra.mxu0 0.0
    %1005 = vmatpush.msra.mxu0 0.0
    %1006 = vmatpush.msra.mxu0 0.0
    %1007 = vmatpush.msra.mxu0 0.0
    %1008 = vmatpush.msra.mxu0 0.0
    %1009 = vmatpush.msra.mxu0 0.0
    %1010 = vmatpush.msra.mxu0 0.0
    %1011 = vmatpush.msra.mxu0 0.0
    %1012 = vmatpush.msra.mxu0 %v958
    %1013 = vmatpush.msra.mxu0 %v954
    %1014 = vmatmul.f32.gmra.mxu0 %v970
    %v1015 = vpop.f32.mrf.mxu0
    %v1016 = vadd.f32 %v962, %v1015
    %1017 = vmatmul.f32.gmra.mxu0 %v973
    %v1018 = vpop.f32.mrf.mxu0
    %v1019 = vadd.f32 %v966, %v1018
    %1020 = vdwg.mxu0
    %1021 = vmatpush.msra.mxu0 0.0
    %1022 = vmatpush.msra.mxu0 0.0
    %1023 = vmatpush.msra.mxu0 0.0
    %1024 = vmatpush.msra.mxu0 0.0
    %1025 = vmatpush.msra.mxu0 0.0
    %1026 = vmatpush.msra.mxu0 0.0
    %1027 = vmatpush.msra.mxu0 0.0
    %1028 = vmatpush.msra.mxu0 0.0
    %1029 = vmatpush.msra.mxu0 0.0
    %1030 = vmatpush.msra.mxu0 0.0
    %1031 = vmatpush.msra.mxu0 0.0
    %1032 = vmatpush.msra.mxu0 0.0
    %1033 = vmatpush.msra.mxu0 0.0
    %1034 = vmatpush.msra.mxu0 0.0
    %1035 = vmatpush.msra.mxu0 %v959
    %1036 = vmatpush.msra.mxu0 %v955
    %1037 = vmatmul.f32.gmra.mxu0 %v970
    %v1038 = vpop.f32.mrf.mxu0
    %v1039 = vadd.f32 %v963, %v1038
    %1040 = vmatmul.f32.gmra.mxu0 %v973
    %v1041 = vpop.f32.mrf.mxu0
    %v1042 = vadd.f32 %v967, %v1041
    %1043 = vdwg.mxu0
    %1044 = vmatpush.msra.mxu0 0.0
    %1045 = vmatpush.msra.mxu0 0.0
    %1046 = vmatpush.msra.mxu0 0.0
    %1047 = vmatpush.msra.mxu0 0.0
    %1048 = vmatpush.msra.mxu0 0.0
    %1049 = vmatpush.msra.mxu0 0.0
    %1050 = vmatpush.msra.mxu0 0.0
    %1051 = vmatpush.msra.mxu0 0.0
    %1052 = vmatpush.msra.mxu0 0.0
    %1053 = vmatpush.msra.mxu0 0.0
    %1054 = vmatpush.msra.mxu0 0.0
    %1055 = vmatpush.msra.mxu0 0.0
    %1056 = vmatpush.msra.mxu0 0.0
    %1057 = vmatpush.msra.mxu0 0.0
    %1058 = vmatpush.msra.mxu0 %v960
    %1059 = vmatpush.msra.mxu0 %v956
    %1060 = vmatmul.f32.gmra.mxu0 %v970
    %v1061 = vpop.f32.mrf.mxu0
    %v1062 = vadd.f32 %v964, %v1061
    %1063 = vmatmul.f32.gmra.mxu0 %v973
    %v1064 = vpop.f32.mrf.mxu0
    %v1065 = vadd.f32 %v968, %v1064
    %1066 = vdwg.mxu0
    %v1067 = vld [vmem:[#allocation24] sm:$0xff]
    %v1068 = vld [vmem:[#allocation24 + $0x8] sm:$0xff]
    %v1069 = vld [vmem:[#allocation24 + $0x10] sm:$0xff]
    %v1070 = vld [vmem:[#allocation24 + $0x18] sm:$0xff]
    %1071 = vrot.lane.b32.xlu0 %v993, 32
    %v1072 = vpop.permute.xlu0 %1071
    %1073 = vrot.lane.b32.xlu0 %v1016, 32
    %v1074 = vpop.permute.xlu0 %1073
    %1075 = vrot.lane.b32.xlu0 %v1039, 32
    %v1076 = vpop.permute.xlu0 %1075
    %1077 = vrot.lane.b32.xlu0 %v1062, 32
    %v1078 = vpop.permute.xlu0 %1077
    %v1079 = vsel %vm480, %v1076, %v1078
    %v1080 = vsel %vm480, %v1074, %v1076
    %v1081 = vsel %vm480, %v1072, %v1074
    %v1082 = vsel %vm480, %v1078, %v1072
    %v1083 = vmul.f32 %v1082, %v1067
    %v1084 = vmul.f32 %v1081, %v1068
    %v1085 = vmul.f32 %v1080, %v1069
    %v1086 = vmul.f32 %v1079, %v1070
    %1087 = vst [vmem:[#allocation2] sm:$0xff] %v1083
    %1088 = vst [vmem:[#allocation2 + $0x8] sm:$0xff] %v1084
    %1089 = vst [vmem:[#allocation2 + $0x10] sm:$0xff] %v1085
    %1090 = vst [vmem:[#allocation2 + $0x18] sm:$0xff] %v1086
    %v1091 = vld [vmem:[%s493] sm:$0xff]
    %v1092 = vld [vmem:[%s493 + $0x8] sm:$0xff]
    %v1093 = vld [vmem:[%s493 + $0x10] sm:$0xff]
    %v1094 = vld [vmem:[%s493 + $0x18] sm:$0xff]
    %1095 = vrot.lane.b32.xlu0 %v993, 16
    %v1096 = vpop.permute.xlu0 %1095
    %1097 = vrot.lane.b32.xlu0 %v1016, 16
    %v1098 = vpop.permute.xlu0 %1097
    %1099 = vrot.lane.b32.xlu0 %v1039, 16
    %v1100 = vpop.permute.xlu0 %1099
    %1101 = vrot.lane.b32.xlu0 %v1062, 16
    %v1102 = vpop.permute.xlu0 %1101
    %v1103 = vsel %vm506, %v1100, %v1102
    %v1104 = vsel %vm506, %v1098, %v1100
    %v1105 = vsel %vm506, %v1096, %v1098
    %v1106 = vsel %vm506, %v1102, %v1096
    %v1107 = vmul.f32 %v1106, %v1091
    %v1108 = vmul.f32 %v1105, %v1092
    %v1109 = vmul.f32 %v1104, %v1093
    %v1110 = vmul.f32 %v1103, %v1094
    %1111 = vst [vmem:[#allocation2 + $0x20] sm:$0xff] %v1107
    %1112 = vst [vmem:[#allocation2 + $0x28] sm:$0xff] %v1108
    %1113 = vst [vmem:[#allocation2 + $0x30] sm:$0xff] %v1109
    %1114 = vst [vmem:[#allocation2 + $0x38] sm:$0xff] %v1110
    %1115 = vst [vmem:[#allocation2 + $0x40] sm:$0xff] %v993
    %1116 = vst [vmem:[#allocation2 + $0x48] sm:$0xff] %v1016
    %1117 = vst [vmem:[#allocation2 + $0x50] sm:$0xff] %v1039
    %1118 = vst [vmem:[#allocation2 + $0x58] sm:$0xff] %v1062
    %v1119 = vld [vmem:[%s523] sm:$0xff]
    %v1120 = vld [vmem:[%s523 + $0x8] sm:$0xff]
    %v1121 = vld [vmem:[%s523 + $0x10] sm:$0xff]
    %v1122 = vld [vmem:[%s523 + $0x18] sm:$0xff]
    %1123 = vrot.lane.b32.xlu0 %v993, 112
    %v1124 = vpop.permute.xlu0 %1123
    %1125 = vrot.lane.b32.xlu0 %v1016, 112
    %v1126 = vpop.permute.xlu0 %1125
    %1127 = vrot.lane.b32.xlu0 %v1039, 112
    %v1128 = vpop.permute.xlu0 %1127
    %1129 = vrot.lane.b32.xlu0 %v1062, 112
    %v1130 = vpop.permute.xlu0 %1129
    %v1131 = vsel %vm536, %v1128, %v1130
    %v1132 = vsel %vm536, %v1126, %v1128
    %v1133 = vsel %vm536, %v1124, %v1126
    %v1134 = vsel %vm536, %v1130, %v1124
    %v1135 = vmul.f32 %v1133, %v1119
    %v1136 = vmul.f32 %v1132, %v1120
    %v1137 = vmul.f32 %v1131, %v1121
    %v1138 = vmul.f32 %v1134, %v1122
    %1139 = vst [vmem:[#allocation2 + $0x60] sm:$0xff] %v1135
    %1140 = vst [vmem:[#allocation2 + $0x68] sm:$0xff] %v1136
    %1141 = vst [vmem:[#allocation2 + $0x70] sm:$0xff] %v1137
    %1142 = vst [vmem:[#allocation2 + $0x78] sm:$0xff] %v1138
    %v1143 = vld [vmem:[%s549] sm:$0xff]
    %v1144 = vld [vmem:[%s549 + $0x8] sm:$0xff]
    %v1145 = vld [vmem:[%s549 + $0x10] sm:$0xff]
    %v1146 = vld [vmem:[%s549 + $0x18] sm:$0xff]
    %1147 = vrot.lane.b32.xlu0 %v993, 96
    %v1148 = vpop.permute.xlu0 %1147
    %1149 = vrot.lane.b32.xlu0 %v1016, 96
    %v1150 = vpop.permute.xlu0 %1149
    %1151 = vrot.lane.b32.xlu0 %v1039, 96
    %v1152 = vpop.permute.xlu0 %1151
    %1153 = vrot.lane.b32.xlu0 %v1062, 96
    %v1154 = vpop.permute.xlu0 %1153
    %v1155 = vsel %vm562, %v1152, %v1154
    %v1156 = vsel %vm562, %v1150, %v1152
    %v1157 = vsel %vm562, %v1148, %v1150
    %v1158 = vsel %vm562, %v1154, %v1148
    %v1159 = vmul.f32 %v1157, %v1143
    %v1160 = vmul.f32 %v1156, %v1144
    %v1161 = vmul.f32 %v1155, %v1145
    %v1162 = vmul.f32 %v1158, %v1146
    %1163 = vst [vmem:[#allocation2 + $0x80] sm:$0xff] %v1159
    %1164 = vst [vmem:[#allocation2 + $0x88] sm:$0xff] %v1160
    %1165 = vst [vmem:[#allocation2 + $0x90] sm:$0xff] %v1161
    %1166 = vst [vmem:[#allocation2 + $0x98] sm:$0xff] %v1162
    %v1167 = vld [vmem:[%s11] sm:$0xff]
    %v1168 = vld [vmem:[#allocation2] sm:$0xff]
    %v1169 = vld [vmem:[#allocation2 + $0x8] sm:$0xff]
    %v1170 = vld [vmem:[#allocation2 + $0x10] sm:$0xff]
    %v1171 = vld [vmem:[#allocation2 + $0x18] sm:$0xff]
    %v1172 = vld [vmem:[#allocation2 + $0x20] sm:$0xff]
    %v1173 = vld [vmem:[#allocation2 + $0x28] sm:$0xff]
    %v1174 = vld [vmem:[#allocation2 + $0x30] sm:$0xff]
    %v1175 = vld [vmem:[#allocation2 + $0x38] sm:$0xff]
    %v1176 = vld [vmem:[#allocation2 + $0x40] sm:$0xff]
    %v1177 = vld [vmem:[#allocation2 + $0x48] sm:$0xff]
    %v1178 = vld [vmem:[#allocation2 + $0x50] sm:$0xff]
    %v1179 = vld [vmem:[#allocation2 + $0x58] sm:$0xff]
    %v1180 = vld [vmem:[#allocation2 + $0x60] sm:$0xff]
    %v1181 = vld [vmem:[#allocation2 + $0x68] sm:$0xff]
    %v1182 = vld [vmem:[#allocation2 + $0x70] sm:$0xff]
    %v1183 = vld [vmem:[#allocation2 + $0x78] sm:$0xff]
    %v1184 = vld [vmem:[#allocation2 + $0x80] sm:$0xff]
    %v1185 = vld [vmem:[#allocation2 + $0x88] sm:$0xff]
    %v1186 = vld [vmem:[#allocation2 + $0x90] sm:$0xff]
    %v1187 = vld [vmem:[#allocation2 + $0x98] sm:$0xff]
    %v1188 = vld [vmem:[#allocation19] sm:$0xff]
    %v1189 = vld [vmem:[#allocation19 + $0x8] sm:$0xff]
    %v1190 = vld [vmem:[#allocation19 + $0x10] sm:$0xff]
    %v1191 = vld [vmem:[#allocation19 + $0x18] sm:$0xff]
    %v1193 = vsel %vm600, %v1167, 0
    %1195 = vmatpush.msra.mxu0 0.0
    %1196 = vmatpush.msra.mxu0 0.0
    %1197 = vmatpush.msra.mxu0 0.0
    %1198 = vmatpush.msra.mxu0 0.0
    %1199 = vmatpush.msra.mxu0 0.0
    %1200 = vmatpush.msra.mxu0 0.0
    %1201 = vmatpush.msra.mxu0 0.0
    %1202 = vmatpush.msra.mxu0 0.0
    %1203 = vmatpush.msra.mxu0 0.0
    %1204 = vmatpush.msra.mxu0 0.0
    %1205 = vmatpush.msra.mxu0 0.0
    %1206 = vmatpush.msra.mxu0 %v1184
    %1207 = vmatpush.msra.mxu0 %v1180
    %1208 = vmatpush.msra.mxu0 %v1176
    %1209 = vmatpush.msra.mxu0 %v1172
    %1210 = vmatpush.msra.mxu0 %v1168
    %1211 = vmatmul.f32.gmra.mxu0 %v1193
    %v1212 = vpop.f32.mrf.mxu0
    %v1213 = vadd.f32 %v1188, %v1212
    %1214 = vdwg.mxu0
    %1215 = vmatpush.msra.mxu0 0.0
    %1216 = vmatpush.msra.mxu0 0.0
    %1217 = vmatpush.msra.mxu0 0.0
    %1218 = vmatpush.msra.mxu0 0.0
    %1219 = vmatpush.msra.mxu0 0.0
    %1220 = vmatpush.msra.mxu0 0.0
    %1221 = vmatpush.msra.mxu0 0.0
    %1222 = vmatpush.msra.mxu0 0.0
    %1223 = vmatpush.msra.mxu0 0.0
    %1224 = vmatpush.msra.mxu0 0.0
    %1225 = vmatpush.msra.mxu0 0.0
    %1226 = vmatpush.msra.mxu0 %v1185
    %1227 = vmatpush.msra.mxu0 %v1181
    %1228 = vmatpush.msra.mxu0 %v1177
    %1229 = vmatpush.msra.mxu0 %v1173
    %1230 = vmatpush.msra.mxu0 %v1169
    %1231 = vmatmul.f32.gmra.mxu0 %v1193
    %v1232 = vpop.f32.mrf.mxu0
    %v1233 = vadd.f32 %v1189, %v1232
    %1234 = vdwg.mxu0
    %1235 = vmatpush.msra.mxu0 0.0
    %1236 = vmatpush.msra.mxu0 0.0
    %1237 = vmatpush.msra.mxu0 0.0
    %1238 = vmatpush.msra.mxu0 0.0
    %1239 = vmatpush.msra.mxu0 0.0
    %1240 = vmatpush.msra.mxu0 0.0
    %1241 = vmatpush.msra.mxu0 0.0
    %1242 = vmatpush.msra.mxu0 0.0
    %1243 = vmatpush.msra.mxu0 0.0
    %1244 = vmatpush.msra.mxu0 0.0
    %1245 = vmatpush.msra.mxu0 0.0
    %1246 = vmatpush.msra.mxu0 %v1186
    %1247 = vmatpush.msra.mxu0 %v1182
    %1248 = vmatpush.msra.mxu0 %v1178
    %1249 = vmatpush.msra.mxu0 %v1174
    %1250 = vmatpush.msra.mxu0 %v1170
    %1251 = vmatmul.f32.gmra.mxu0 %v1193
    %v1252 = vpop.f32.mrf.mxu0
    %v1253 = vadd.f32 %v1190, %v1252
    %1254 = vdwg.mxu0
    %1255 = vmatpush.msra.mxu0 0.0
    %1256 = vmatpush.msra.mxu0 0.0
    %1257 = vmatpush.msra.mxu0 0.0
    %1258 = vmatpush.msra.mxu0 0.0
    %1259 = vmatpush.msra.mxu0 0.0
    %1260 = vmatpush.msra.mxu0 0.0
    %1261 = vmatpush.msra.mxu0 0.0
    %1262 = vmatpush.msra.mxu0 0.0
    %1263 = vmatpush.msra.mxu0 0.0
    %1264 = vmatpush.msra.mxu0 0.0
    %1265 = vmatpush.msra.mxu0 0.0
    %1266 = vmatpush.msra.mxu0 %v1187
    %1267 = vmatpush.msra.mxu0 %v1183
    %1268 = vmatpush.msra.mxu0 %v1179
    %1269 = vmatpush.msra.mxu0 %v1175
    %1270 = vmatpush.msra.mxu0 %v1171
    %1271 = vmatmul.f32.gmra.mxu0 %v1193
    %v1272 = vpop.f32.mrf.mxu0
    %v1273 = vadd.f32 %v1191, %v1272
    %1274 = vdwg.mxu0
    %v1275 = vld [vmem:[#allocation25] sm:$0xff]
    %v1276 = vld [vmem:[#allocation25 + $0x8] sm:$0xff]
    %v1277 = vld [vmem:[#allocation25 + $0x10] sm:$0xff]
    %v1278 = vld [vmem:[#allocation25 + $0x18] sm:$0xff]
    %1279 = vrot.lane.b32.xlu0 %v1213, 2
    %v1280 = vpop.permute.xlu0 %1279
    %1281 = vrot.lane.b32.xlu0 %v1233, 2
    %v1282 = vpop.permute.xlu0 %1281
    %1283 = vrot.lane.b32.xlu0 %v1253, 2
    %v1284 = vpop.permute.xlu0 %1283
    %1285 = vrot.lane.b32.xlu0 %v1273, 2
    %v1286 = vpop.permute.xlu0 %1285
    %v1287 = vsel %vm720, %v1284, %v1286
    %v1288 = vsel %vm720, %v1282, %v1284
    %v1289 = vsel %vm720, %v1280, %v1282
    %v1290 = vsel %vm720, %v1286, %v1280
    %v1291 = vmul.f32 %v1290, %v1275
    %v1292 = vmul.f32 %v1289, %v1276
    %v1293 = vmul.f32 %v1288, %v1277
    %v1294 = vmul.f32 %v1287, %v1278
    %1295 = vst [vmem:[#allocation2] sm:$0xff] %v1291
    %1296 = vst [vmem:[#allocation2 + $0x8] sm:$0xff] %v1292
    %1297 = vst [vmem:[#allocation2 + $0x10] sm:$0xff] %v1293
    %1298 = vst [vmem:[#allocation2 + $0x18] sm:$0xff] %v1294
    %v1299 = vld [vmem:[%s733] sm:$0xff]
    %v1300 = vld [vmem:[%s733 + $0x8] sm:$0xff]
    %v1301 = vld [vmem:[%s733 + $0x10] sm:$0xff]
    %v1302 = vld [vmem:[%s733 + $0x18] sm:$0xff]
    %1303 = vrot.lane.b32.xlu0 %v1213, 1
    %v1304 = vpop.permute.xlu0 %1303
    %1305 = vrot.lane.b32.xlu0 %v1233, 1
    %v1306 = vpop.permute.xlu0 %1305
    %1307 = vrot.lane.b32.xlu0 %v1253, 1
    %v1308 = vpop.permute.xlu0 %1307
    %1309 = vrot.lane.b32.xlu0 %v1273, 1
    %v1310 = vpop.permute.xlu0 %1309
    %v1311 = vsel %vm746, %v1308, %v1310
    %v1312 = vsel %vm746, %v1306, %v1308
    %v1313 = vsel %vm746, %v1304, %v1306
    %v1314 = vsel %vm746, %v1310, %v1304
    %v1315 = vmul.f32 %v1314, %v1299
    %v1316 = vmul.f32 %v1313, %v1300
    %v1317 = vmul.f32 %v1312, %v1301
    %v1318 = vmul.f32 %v1311, %v1302
    %1319 = vst [vmem:[#allocation2 + $0x20] sm:$0xff] %v1315
    %1320 = vst [vmem:[#allocation2 + $0x28] sm:$0xff] %v1316
    %1321 = vst [vmem:[#allocation2 + $0x30] sm:$0xff] %v1317
    %1322 = vst [vmem:[#allocation2 + $0x38] sm:$0xff] %v1318
    %1323 = vst [vmem:[#allocation2 + $0x40] sm:$0xff] %v1213
    %1324 = vst [vmem:[#allocation2 + $0x48] sm:$0xff] %v1233
    %1325 = vst [vmem:[#allocation2 + $0x50] sm:$0xff] %v1253
    %1326 = vst [vmem:[#allocation2 + $0x58] sm:$0xff] %v1273
    %v1327 = vld [vmem:[%s763] sm:$0xff]
    %v1328 = vld [vmem:[%s763 + $0x8] sm:$0xff]
    %v1329 = vld [vmem:[%s763 + $0x10] sm:$0xff]
    %v1330 = vld [vmem:[%s763 + $0x18] sm:$0xff]
    %1331 = vrot.lane.b32.xlu0 %v1213, 127
    %v1332 = vpop.permute.xlu0 %1331
    %1333 = vrot.lane.b32.xlu0 %v1233, 127
    %v1334 = vpop.permute.xlu0 %1333
    %1335 = vrot.lane.b32.xlu0 %v1253, 127
    %v1336 = vpop.permute.xlu0 %1335
    %1337 = vrot.lane.b32.xlu0 %v1273, 127
    %v1338 = vpop.permute.xlu0 %1337
    %v1339 = vsel %vm776, %v1336, %v1338
    %v1340 = vsel %vm776, %v1334, %v1336
    %v1341 = vsel %vm776, %v1332, %v1334
    %v1342 = vsel %vm776, %v1338, %v1332
    %v1343 = vmul.f32 %v1341, %v1327
    %v1344 = vmul.f32 %v1340, %v1328
    %v1345 = vmul.f32 %v1339, %v1329
    %v1346 = vmul.f32 %v1342, %v1330
    %1347 = vst [vmem:[#allocation2 + $0x60] sm:$0xff] %v1343
    %1348 = vst [vmem:[#allocation2 + $0x68] sm:$0xff] %v1344
    %1349 = vst [vmem:[#allocation2 + $0x70] sm:$0xff] %v1345
    %1350 = vst [vmem:[#allocation2 + $0x78] sm:$0xff] %v1346
    %v1351 = vld [vmem:[%s789] sm:$0xff]
    %v1352 = vld [vmem:[%s789 + $0x8] sm:$0xff]
    %v1353 = vld [vmem:[%s789 + $0x10] sm:$0xff]
    %v1354 = vld [vmem:[%s789 + $0x18] sm:$0xff]
    %1355 = vrot.lane.b32.xlu0 %v1213, 126
    %v1356 = vpop.permute.xlu0 %1355
    %1357 = vrot.lane.b32.xlu0 %v1233, 126
    %v1358 = vpop.permute.xlu0 %1357
    %1359 = vrot.lane.b32.xlu0 %v1253, 126
    %v1360 = vpop.permute.xlu0 %1359
    %1361 = vrot.lane.b32.xlu0 %v1273, 126
    %v1362 = vpop.permute.xlu0 %1361
    %v1363 = vsel %vm802, %v1360, %v1362
    %v1364 = vsel %vm802, %v1358, %v1360
    %v1365 = vsel %vm802, %v1356, %v1358
    %v1366 = vsel %vm802, %v1362, %v1356
    %v1367 = vmul.f32 %v1365, %v1351
    %v1368 = vmul.f32 %v1364, %v1352
    %v1369 = vmul.f32 %v1363, %v1353
    %v1370 = vmul.f32 %v1366, %v1354
    %1371 = vst [vmem:[#allocation2 + $0x80] sm:$0xff] %v1367
    %1372 = vst [vmem:[#allocation2 + $0x88] sm:$0xff] %v1368
    %1373 = vst [vmem:[#allocation2 + $0x90] sm:$0xff] %v1369
    %1374 = vst [vmem:[#allocation2 + $0x98] sm:$0xff] %v1370
    %v1375 = vld [vmem:[#allocation21] sm:$0xff]
    %v1376 = vld [vmem:[#allocation21 + $0x8] sm:$0xff]
    %v1377 = vld [vmem:[#allocation2] sm:$0xff]
    %v1378 = vld [vmem:[#allocation2 + $0x8] sm:$0xff]
    %v1379 = vld [vmem:[#allocation2 + $0x10] sm:$0xff]
    %v1380 = vld [vmem:[#allocation2 + $0x18] sm:$0xff]
    %v1381 = vld [vmem:[#allocation2 + $0x20] sm:$0xff]
    %v1382 = vld [vmem:[#allocation2 + $0x28] sm:$0xff]
    %v1383 = vld [vmem:[#allocation2 + $0x30] sm:$0xff]
    %v1384 = vld [vmem:[#allocation2 + $0x38] sm:$0xff]
    %v1385 = vld [vmem:[#allocation2 + $0x40] sm:$0xff]
    %v1386 = vld [vmem:[#allocation2 + $0x48] sm:$0xff]
    %v1387 = vld [vmem:[#allocation2 + $0x50] sm:$0xff]
    %v1388 = vld [vmem:[#allocation2 + $0x58] sm:$0xff]
    %v1389 = vld [vmem:[#allocation2 + $0x60] sm:$0xff]
    %v1390 = vld [vmem:[#allocation2 + $0x68] sm:$0xff]
    %v1391 = vld [vmem:[#allocation2 + $0x70] sm:$0xff]
    %v1392 = vld [vmem:[#allocation2 + $0x78] sm:$0xff]
    %v1393 = vld [vmem:[#allocation2 + $0x80] sm:$0xff]
    %v1394 = vld [vmem:[#allocation2 + $0x88] sm:$0xff]
    %v1395 = vld [vmem:[#allocation2 + $0x90] sm:$0xff]
    %v1396 = vld [vmem:[#allocation2 + $0x98] sm:$0xff]
    %v1397 = vld [vmem:[#allocation22] sm:$0xff]
    %v1398 = vld [vmem:[#allocation22 + $0x8] sm:$0xff]
    %v1399 = vld [vmem:[#allocation22 + $0x10] sm:$0xff]
    %v1400 = vld [vmem:[#allocation22 + $0x18] sm:$0xff]
    %v1401 = vld [vmem:[#allocation22 + $0x20] sm:$0xff]
    %v1402 = vld [vmem:[#allocation22 + $0x28] sm:$0xff]
    %v1403 = vld [vmem:[#allocation22 + $0x30] sm:$0xff]
    %v1404 = vld [vmem:[#allocation22 + $0x38] sm:$0xff]
    %v1406 = vsel %vm600, %v1375, 0
    %v1409 = vsel %vm600, %v1376, 0
    %1411 = vmatpush.msra.mxu0 0.0
    %1412 = vmatpush.msra.mxu0 0.0
    %1413 = vmatpush.msra.mxu0 0.0
    %1414 = vmatpush.msra.mxu0 0.0
    %1415 = vmatpush.msra.mxu0 0.0
    %1416 = vmatpush.msra.mxu0 0.0
    %1417 = vmatpush.msra.mxu0 0.0
    %1418 = vmatpush.msra.mxu0 0.0
    %1419 = vmatpush.msra.mxu0 0.0
    %1420 = vmatpush.msra.mxu0 0.0
    %1421 = vmatpush.msra.mxu0 0.0
    %1422 = vmatpush.msra.mxu0 %v1393
    %1423 = vmatpush.msra.mxu0 %v1389
    %1424 = vmatpush.msra.mxu0 %v1385
    %1425 = vmatpush.msra.mxu0 %v1381
    %1426 = vmatpush.msra.mxu0 %v1377
    %1427 = vmatmul.f32.gmra.mxu0 %v1406
    %v1428 = vpop.f32.mrf.mxu0
    %v1429 = vadd.f32 %v1397, %v1428
    %1430 = vmatmul.f32.gmra.mxu0 %v1409
    %v1431 = vpop.f32.mrf.mxu0
    %v1432 = vadd.f32 %v1401, %v1431
    %1433 = vdwg.mxu0
    %1434 = vmatpush.msra.mxu0 0.0
    %1435 = vmatpush.msra.mxu0 0.0
    %1436 = vmatpush.msra.mxu0 0.0
    %1437 = vmatpush.msra.mxu0 0.0
    %1438 = vmatpush.msra.mxu0 0.0
    %1439 = vmatpush.msra.mxu0 0.0
    %1440 = vmatpush.msra.mxu0 0.0
    %1441 = vmatpush.msra.mxu0 0.0
    %1442 = vmatpush.msra.mxu0 0.0
    %1443 = vmatpush.msra.mxu0 0.0
    %1444 = vmatpush.msra.mxu0 0.0
    %1445 = vmatpush.msra.mxu0 %v1394
    %1446 = vmatpush.msra.mxu0 %v1390
    %1447 = vmatpush.msra.mxu0 %v1386
    %1448 = vmatpush.msra.mxu0 %v1382
    %1449 = vmatpush.msra.mxu0 %v1378
    %1450 = vmatmul.f32.gmra.mxu0 %v1406
    %v1451 = vpop.f32.mrf.mxu0
    %v1452 = vadd.f32 %v1398, %v1451
    %1453 = vmatmul.f32.gmra.mxu0 %v1409
    %v1454 = vpop.f32.mrf.mxu0
    %v1455 = vadd.f32 %v1402, %v1454
    %1456 = vdwg.mxu0
    %1457 = vmatpush.msra.mxu0 0.0
    %1458 = vmatpush.msra.mxu0 0.0
    %1459 = vmatpush.msra.mxu0 0.0
    %1460 = vmatpush.msra.mxu0 0.0
    %1461 = vmatpush.msra.mxu0 0.0
    %1462 = vmatpush.msra.mxu0 0.0
    %1463 = vmatpush.msra.mxu0 0.0
    %1464 = vmatpush.msra.mxu0 0.0
    %1465 = vmatpush.msra.mxu0 0.0
    %1466 = vmatpush.msra.mxu0 0.0
    %1467 = vmatpush.msra.mxu0 0.0
    %1468 = vmatpush.msra.mxu0 %v1395
    %1469 = vmatpush.msra.mxu0 %v1391
    %1470 = vmatpush.msra.mxu0 %v1387
    %1471 = vmatpush.msra.mxu0 %v1383
    %1472 = vmatpush.msra.mxu0 %v1379
    %1473 = vmatmul.f32.gmra.mxu0 %v1406
    %v1474 = vpop.f32.mrf.mxu0
    %v1475 = vadd.f32 %v1399, %v1474
    %1476 = vmatmul.f32.gmra.mxu0 %v1409
    %v1477 = vpop.f32.mrf.mxu0
    %v1478 = vadd.f32 %v1403, %v1477
    %1479 = vdwg.mxu0
    %1480 = vmatpush.msra.mxu0 0.0
    %1481 = vmatpush.msra.mxu0 0.0
    %1482 = vmatpush.msra.mxu0 0.0
    %1483 = vmatpush.msra.mxu0 0.0
    %1484 = vmatpush.msra.mxu0 0.0
    %1485 = vmatpush.msra.mxu0 0.0
    %1486 = vmatpush.msra.mxu0 0.0
    %1487 = vmatpush.msra.mxu0 0.0
    %1488 = vmatpush.msra.mxu0 0.0
    %1489 = vmatpush.msra.mxu0 0.0
    %1490 = vmatpush.msra.mxu0 0.0
    %1491 = vmatpush.msra.mxu0 %v1396
    %1492 = vmatpush.msra.mxu0 %v1392
    %1493 = vmatpush.msra.mxu0 %v1388
    %1494 = vmatpush.msra.mxu0 %v1384
    %1495 = vmatpush.msra.mxu0 %v1380
    %1496 = vmatmul.f32.gmra.mxu0 %v1406
    %v1497 = vpop.f32.mrf.mxu0
    %v1498 = vadd.f32 %v1400, %v1497
    %1499 = vmatmul.f32.gmra.mxu0 %v1409
    %v1500 = vpop.f32.mrf.mxu0
    %v1501 = vadd.f32 %v1404, %v1500
    %1502 = vdwg.mxu0
    %v1503 = vadd.f32 %v993, %v1429
    %v1504 = vadd.f32 %v1016, %v1452
    %v1505 = vadd.f32 %v1039, %v1475
    %v1506 = vadd.f32 %v1062, %v1498
    %v1507 = vadd.f32 %v996, %v1432
    %v1508 = vadd.f32 %v1019, %v1455
    %v1509 = vadd.f32 %v1042, %v1478
    %v1510 = vadd.f32 %v1065, %v1501
    %v1511 = vld [vmem:[#allocation4] sm:$0xff]
    %v1512 = vld [vmem:[#allocation4 + $0x8] sm:$0xff]
    %v1513 = vld [vmem:[#allocation4 + $0x10] sm:$0xff]
    %v1514 = vld [vmem:[#allocation4 + $0x18] sm:$0xff]
    %v1515 = vld [vmem:[#allocation4 + $0x20] sm:$0xff]
    %v1516 = vld [vmem:[#allocation4 + $0x28] sm:$0xff]
    %v1517 = vld [vmem:[#allocation4 + $0x30] sm:$0xff]
    %v1518 = vld [vmem:[#allocation4 + $0x38] sm:$0xff]
    %v1519 = vadd.f32 %v1503, %v1511
    %v1520 = vadd.f32 %v1504, %v1512
    %v1521 = vadd.f32 %v1505, %v1513
    %v1522 = vadd.f32 %v1506, %v1514
    %v1523 = vadd.f32 %v1507, %v1515
    %v1524 = vadd.f32 %v1508, %v1516
    %v1525 = vadd.f32 %v1509, %v1517
    %v1526 = vadd.f32 %v1510, %v1518
    %1527 = vst [vmem:[#allocation27] sm:$0xff] %v1519
    %1528 = vst [vmem:[#allocation27 + $0x8] sm:$0xff] %v1520
    %1529 = vst [vmem:[#allocation27 + $0x10] sm:$0xff] %v1521
    %1530 = vst [vmem:[#allocation27 + $0x18] sm:$0xff] %v1522
    %1531 = vst [vmem:[#allocation27 + $0x20] sm:$0xff] %v1523
    %1532 = vst [vmem:[#allocation27 + $0x28] sm:$0xff] %v1524
    %1533 = vst [vmem:[#allocation27 + $0x30] sm:$0xff] %v1525
    %1534 = vst [vmem:[#allocation27 + $0x38] sm:$0xff] %v1526
    // Predicated region
    $region126: #{tpu_custom_call.1} parent=1 // pred_check
      _
    $region127: #{tpu_custom_call.1} parent=1 // pred_check_branch
      %1536 = sbr.rel (0) target = $region129
    $region128: #{tpu_custom_call.1} parent=1 // pred_region
      %1538 = vsyncadd [#allocation6], 0
      %s1539 = sshll.u32 [#allocation27], 4
      %s1540 = int_to_ptr.vmem [resolvable:$true] %s1539
      %s1541 = sshll.u32 %s17, 4
      %s1542 = int_to_ptr.hbm [resolvable:$true] %s1541
      %1547 = dma.vmem_to_hbm [thread:$0]  %s1540, 1024, %s1542, [#allocation6], 512, 512, 32
    $region129: #{tpu_custom_call.1} parent=1 // pred_fallthru
      _
    // Predicated region
    $region130: #{tpu_custom_call.1} parent=1 // pred_check
      _
    $region131: #{tpu_custom_call.1} parent=1 // pred_check_branch
      %1549 = sbr.rel (0) target = $region133
    $region132: #{tpu_custom_call.1} parent=1 // pred_region
      %1551 = dma.done [#allocation6], 1024
    $region133: #{tpu_custom_call.1} parent=1 // pred_fallthru
      _
    %1552 = vsyncpa [#allocation5], 1
    %1553 = vsyncpa [#allocation8], 1
    %1554 = vsyncpa [#allocation11], 1
    %1555 = vsyncpa [#allocation14], 1
    %1556 = vsyncpa [#allocation17], 1
    %1557 = vsyncpa [#allocation20], 1
    %1558 = vsyncpa [#allocation23], 1
    %1559 = vsyncpa [#allocation26], 1
    %1560 = vsyncpa [#allocation6], 1

</llo_original>
